<compile_context>
chip_gen: v6e
topology: v6e:2x2x1
jax: 0.10.0
libtpu: 0.0.40
codegen_flags: <defaults>
</compile_context>

<pallas_src>
import functools

import jax
import jax.numpy as jnp
from jax import lax
from jax.experimental import pallas as pl
from jax.experimental.pallas import tpu as pltpu

LANE = 128      # f32 lane width
SUBLANE = 8     # f32 sublane count
NEG = -1e30     # "minus infinity" for masked (padded) logits


def _round_up(n, m):
    return ((n + m - 1) // m) * m


def padded_dims(n_categories, input_size, hidden_size, output_size):
    p = lambda n: _round_up(max(n, 1), LANE)
    return p(n_categories), p(input_size), p(hidden_size), p(output_size)


# ---------------------------------------------------------------------------
# Kernel
# ---------------------------------------------------------------------------
def rnn_seq_kernel(cat_ref, x_ref, h0_ref,
                   w_i2h_c, w_i2h_x, w_i2h_h, b_i2h,
                   w_i2o_c, w_i2o_x, w_i2o_h, b_i2o,
                   w_o2o_h, w_o2o_o, b_o2o,
                   out_ref, hT_ref,
                   h_scr,
                   *, out_size):
    """One grid step == one RNN timestep for one batch chunk."""
    t = pl.program_id(1)

    # Initialize the carried hidden state at the first timestep of this chunk.
    @pl.when(t == 0)
    def _():
        h_scr[...] = h0_ref[...]

    h = h_scr[...]
    cat = cat_ref[...]
    x = x_ref[...]

    dot = functools.partial(jnp.dot, preferred_element_type=jnp.float32)

    # i2h(cat(category, input, hidden)) as split matmuls (same math, no concat).
    hidden = (dot(cat, w_i2h_c[...]) + dot(x, w_i2h_x[...])
              + dot(h, w_i2h_h[...]) + b_i2h[...])

    # i2o(cat(category, input, hidden))
    out1 = (dot(cat, w_i2o_c[...]) + dot(x, w_i2o_x[...])
            + dot(h, w_i2o_h[...]) + b_i2o[...])

    # o2o(cat(hidden', out1))
    out2 = dot(hidden, w_o2o_h[...]) + dot(out1, w_o2o_o[...]) + b_o2o[...]

    # Dropout(p=0.1): identity in eval/inference mode.
    # TODO(synk): training-mode dropout (pltpu.prng_*) not implemented.

    # LogSoftmax(dim=1) over the *real* output lanes only: mask padded lanes.
    lane = lax.broadcasted_iota(jnp.int32, out2.shape, 1)
    out2 = jnp.where(lane < out_size, out2, NEG)
    m = jnp.max(out2, axis=1, keepdims=True)
    lse = m + jnp.log(jnp.sum(jnp.exp(out2 - m), axis=1, keepdims=True))
    out_ref[...] = out2 - lse

    # Carry hidden state; also expose it (last write = final hidden).
    h_scr[...] = hidden
    hT_ref[...] = hidden


# ---------------------------------------------------------------------------
# Wrapper
# ---------------------------------------------------------------------------
def rnn_forward_sequence(category_seq, input_seq, hidden0, padded_params,
                         n_categories, input_size, hidden_size, output_size):
    """Runs the RNN cell over a whole sequence in one pallas_call.

    category_seq: (T, B, n_categories)   per-step category (module signature)
    input_seq:    (T, B, input_size)
    hidden0:      (B, hidden_size)
    Returns (out_seq (T, B, output_size), hidden_T (B, hidden_size)).
    """
    T, B, _ = input_seq.shape
    CAT_P, IN_P, HID_P, OUT_P = padded_dims(
        n_categories, input_size, hidden_size, output_size)

    # Pad batch to sublane multiple, features to lane multiples (zeros).
    B_P = _round_up(max(B, 1), SUBLANE)
    cat_p = jnp.zeros((T, B_P, CAT_P), jnp.float32
                      ).at[:, :B, :n_categories].set(category_seq)
    x_p = jnp.zeros((T, B_P, IN_P), jnp.float32
                    ).at[:, :B, :input_size].set(input_seq)
    h0_p = jnp.zeros((B_P, HID_P), jnp.float32
                     ).at[:B, :hidden_size].set(hidden0)

    # Batch-chunk size: shardable "parallel" grid axis (useful on v7x 2-TC).
    BB = B_P if B_P % LANE != 0 else LANE
    NB = B_P // BB

    weight_names = ("w_i2h_c", "w_i2h_x", "w_i2h_h", "b_i2h",
                    "w_i2o_c", "w_i2o_x", "w_i2o_h", "b_i2o",
                    "w_o2o_h", "w_o2o_o", "b_o2o")
    weight_args = [padded_params[n] for n in weight_names]
    # Weights/biases: constant block index -> VMEM-resident across the grid.
    weight_specs = [pl.BlockSpec(w.shape, lambda b, t: (0, 0))
                    for w in weight_args]

    in_specs = [
        pl.BlockSpec((None, BB, CAT_P), lambda b, t: (t, b, 0)),   # category[t]
        pl.BlockSpec((None, BB, IN_P), lambda b, t: (t, b, 0)),    # input[t]
        pl.BlockSpec((BB, HID_P), lambda b, t: (b, 0)),            # hidden0
    ] + weight_specs

    out_specs = (
        pl.BlockSpec((None, BB, OUT_P), lambda b, t: (t, b, 0)),   # out[t]
        pl.BlockSpec((BB, HID_P), lambda b, t: (b, 0)),            # final hidden
    )

    kernel = functools.partial(rnn_seq_kernel, out_size=output_size)

    out_p, hT_p = pl.pallas_call(
        kernel,
        out_shape=(jax.ShapeDtypeStruct((T, B_P, OUT_P), jnp.float32),
                   jax.ShapeDtypeStruct((B_P, HID_P), jnp.float32)),
        grid=(NB, T),
        in_specs=in_specs,
        out_specs=out_specs,
        scratch_shapes=[pltpu.VMEM((BB, HID_P), jnp.float32)],
        compiler_params=pltpu.CompilerParams(
            dimension_semantics=("parallel", "arbitrary")),
    )(cat_p, x_p, h0_p, *weight_args)

    return out_p[:, :B, :output_size], hT_p[:B, :hidden_size]


# ---------------------------------------------------------------------------
# Parameters
# ---------------------------------------------------------------------------
def init_params(key, n_categories, input_size, hidden_size, output_size):
    """nn.Linear-style init U(-1/sqrt(fan_in), 1/sqrt(fan_in)); weights stored
    transposed as (in_features, out_features)."""
    C = n_categories + input_size + hidden_size
    ks = jax.random.split(key, 6)

    def lin(kw, kb, fan_in, fan_out):
        bound = 1.0 / jnp.sqrt(jnp.float32(fan_in))
        w = jax.random.uniform(kw, (fan_in, fan_out), jnp.float32, -bound, bound)
        b = jax.random.uniform(kb, (1, fan_out), jnp.float32, -bound, bound)
        return w, b

    w_i2h, b_i2h = lin(ks[0], ks[1], C, hidden_size)
    w_i2o, b_i2o = lin(ks[2], ks[3], C, output_size)
    w_o2o, b_o2o = lin(ks[4], ks[5], hidden_size + output_size, output_size)
    return {"w_i2h": w_i2h, "b_i2h": b_i2h,
            "w_i2o": w_i2o, "b_i2o": b_i2o,
            "w_o2o": w_o2o, "b_o2o": b_o2o}


def pad_params(params, n_categories, input_size, hidden_size, output_size):
    """Split i2h/i2o/o2o into (category|input|hidden) / (hidden|out) row blocks
    and zero-pad every dim to lane multiples (zeros -> padded lanes contribute 0)."""
    CAT_P, IN_P, HID_P, OUT_P = padded_dims(
        n_categories, input_size, hidden_size, output_size)

    def pad2(w, rows, cols):
        return jnp.zeros((rows, cols), jnp.float32
                         ).at[:w.shape[0], :w.shape[1]].set(w)

    sl_c = slice(0, n_categories)
    sl_x = slice(n_categories, n_categories + input_size)
    sl_h = slice(n_categories + input_size, None)
    w_i2h, w_i2o, w_o2o = params["w_i2h"], params["w_i2o"], params["w_o2o"]

    return {
        "w_i2h_c": pad2(w_i2h[sl_c], CAT_P, HID_P),
        "w_i2h_x": pad2(w_i2h[sl_x], IN_P, HID_P),
        "w_i2h_h": pad2(w_i2h[sl_h], HID_P, HID_P),
        "b_i2h":   pad2(params["b_i2h"], 1, HID_P),
        "w_i2o_c": pad2(w_i2o[sl_c], CAT_P, OUT_P),
        "w_i2o_x": pad2(w_i2o[sl_x], IN_P, OUT_P),
        "w_i2o_h": pad2(w_i2o[sl_h], HID_P, OUT_P),
        "b_i2o":   pad2(params["b_i2o"], 1, OUT_P),
        "w_o2o_h": pad2(w_o2o[:hidden_size], HID_P, OUT_P),
        "w_o2o_o": pad2(w_o2o[hidden_size:], OUT_P, OUT_P),
        "b_o2o":   pad2(params["b_o2o"], 1, OUT_P),
    }


# ---------------------------------------------------------------------------
# Reference (pure JAX, mirrors the PyTorch forward exactly)
# ---------------------------------------------------------------------------
def ref_step(category, inputs, hidden, params):
    combined = jnp.concatenate([category, inputs, hidden], axis=1)
    new_hidden = combined @ params["w_i2h"] + params["b_i2h"]
    out1 = combined @ params["w_i2o"] + params["b_i2o"]
    oc = jnp.concatenate([new_hidden, out1], axis=1)
    out2 = oc @ params["w_o2o"] + params["b_o2o"]
    return jax.nn.log_softmax(out2, axis=1), new_hidden


if __name__ == "__main__":
    n_categories, input_size, hidden_size, output_size = 4, 8, 32, 16
    batch, seq = 2, 8

    key = jax.random.PRNGKey(0)
    kp, kc, ki = jax.random.split(key, 3)

    params = init_params(kp, n_categories, input_size, hidden_size, output_size)
    pparams = pad_params(params, n_categories, input_size, hidden_size,
                         output_size)

    category_seq = jax.random.normal(kc, (seq, batch, n_categories), jnp.float32)
    input_seq = jax.random.normal(ki, (seq, batch, input_size), jnp.float32)
    hidden0 = jnp.zeros((batch, hidden_size), jnp.float32)  # init_hidden()

    out_seq, hidden_T = rnn_forward_sequence(
        category_seq, input_seq, hidden0, pparams,
        n_categories, input_size, hidden_size, output_size)
    jax.block_until_ready((out_seq, hidden_T))

    # Reference: apply the module forward step-by-step in plain JAX.
    h = hidden0
    ref_outs = []
    for t in range(seq):
        o, h = ref_step(category_seq[t], input_seq[t], h, params)
        ref_outs.append(o)
    ref_out_seq = jnp.stack(ref_outs, axis=0)

    assert jnp.allclose(out_seq, ref_out_seq, atol=1e-4, rtol=1e-4), "output mismatch"
    assert jnp.allclose(hidden_T, h, atol=1e-4, rtol=1e-4), "hidden mismatch"

    print("KERNEL_OK")
</pallas_src>

<mosaic_0001>
module attributes {stable_mosaic.version = 11 : i64} {
  func.func @rnn_seq_kernel(%arg0: i32, %arg1: i32, %arg2: memref<1x8x128xf32, #tpu.memory_space<vmem>>, %arg3: memref<1x8x128xf32, #tpu.memory_space<vmem>>, %arg4: memref<8x128xf32, #tpu.memory_space<vmem>>, %arg5: memref<128x128xf32, #tpu.memory_space<vmem>>, %arg6: memref<128x128xf32, #tpu.memory_space<vmem>>, %arg7: memref<128x128xf32, #tpu.memory_space<vmem>>, %arg8: memref<1x128xf32, #tpu.memory_space<vmem>>, %arg9: memref<128x128xf32, #tpu.memory_space<vmem>>, %arg10: memref<128x128xf32, #tpu.memory_space<vmem>>, %arg11: memref<128x128xf32, #tpu.memory_space<vmem>>, %arg12: memref<1x128xf32, #tpu.memory_space<vmem>>, %arg13: memref<128x128xf32, #tpu.memory_space<vmem>>, %arg14: memref<128x128xf32, #tpu.memory_space<vmem>>, %arg15: memref<1x128xf32, #tpu.memory_space<vmem>>, %arg16: memref<1x8x128xf32, #tpu.memory_space<vmem>>, %arg17: memref<8x128xf32, #tpu.memory_space<vmem>>, %arg18: memref<8x128xf32, #tpu.memory_space<vmem>>) attributes {dimension_semantics = [#tpu.dimension_semantics<parallel>, #tpu.dimension_semantics<arbitrary>], iteration_bounds = array<i64: 1, 8>, scalar_prefetch = 0 : i64, scratch_operands = 1 : i64, tpu.core_type = #tpu.core_type<tc>, window_params = [{transform_indices = @transform_0, window_bounds = array<i64: 1, 8, 128>}, {transform_indices = @transform_1, window_bounds = array<i64: 1, 8, 128>}, {transform_indices = @transform_2, window_bounds = array<i64: 8, 128>}, {pipeline_mode = #tpu.pipeline_mode<synchronous>, transform_indices = @transform_3, window_bounds = array<i64: 128, 128>}, {pipeline_mode = #tpu.pipeline_mode<synchronous>, transform_indices = @transform_4, window_bounds = array<i64: 128, 128>}, {pipeline_mode = #tpu.pipeline_mode<synchronous>, transform_indices = @transform_5, window_bounds = array<i64: 128, 128>}, {pipeline_mode = #tpu.pipeline_mode<synchronous>, transform_indices = @transform_6, window_bounds = array<i64: 1, 128>}, {pipeline_mode = #tpu.pipeline_mode<synchronous>, transform_indices = @transform_7, window_bounds = array<i64: 128, 128>}, {pipeline_mode = #tpu.pipeline_mode<synchronous>, transform_indices = @transform_8, window_bounds = array<i64: 128, 128>}, {pipeline_mode = #tpu.pipeline_mode<synchronous>, transform_indices = @transform_9, window_bounds = array<i64: 128, 128>}, {pipeline_mode = #tpu.pipeline_mode<synchronous>, transform_indices = @transform_10, window_bounds = array<i64: 1, 128>}, {pipeline_mode = #tpu.pipeline_mode<synchronous>, transform_indices = @transform_11, window_bounds = array<i64: 128, 128>}, {pipeline_mode = #tpu.pipeline_mode<synchronous>, transform_indices = @transform_12, window_bounds = array<i64: 128, 128>}, {pipeline_mode = #tpu.pipeline_mode<synchronous>, transform_indices = @transform_13, window_bounds = array<i64: 1, 128>}, {transform_indices = @transform_14, window_bounds = array<i64: 1, 8, 128>}, {transform_indices = @transform_15, window_bounds = array<i64: 8, 128>}]} {
    %c0_i32 = arith.constant 0 : i32
    %0 = arith.cmpi eq, %arg1, %c0_i32 : i32
    %1 = arith.extui %0 : i1 to i32
    %c0_i32_0 = arith.constant 0 : i32
    %2 = arith.cmpi ne, %1, %c0_i32_0 : i32
    scf.if %2 {
      %c0_47 = arith.constant 0 : index
      %c0_48 = arith.constant 0 : index
      %59 = vector.load %arg4[%c0_47, %c0_48] : memref<8x128xf32, #tpu.memory_space<vmem>>, vector<8x128xf32>
      %c0_49 = arith.constant 0 : index
      %c0_50 = arith.constant 0 : index
      %60 = vector.load %arg18[%c0_49, %c0_50] : memref<8x128xf32, #tpu.memory_space<vmem>>, vector<8x128xf32>
      tpu.vector_store %arg18[%c0_49, %c0_50], %59 {strides = array<i32>} : memref<8x128xf32, #tpu.memory_space<vmem>>, vector<8x128xf32>,
    } else {
    }
    %c0 = arith.constant 0 : index
    %c0_1 = arith.constant 0 : index
    %3 = vector.load %arg18[%c0, %c0_1] : memref<8x128xf32, #tpu.memory_space<vmem>>, vector<8x128xf32>
    %c0_2 = arith.constant 0 : index
    %c0_3 = arith.constant 0 : index
    %c0_4 = arith.constant 0 : index
    %4 = vector.load %arg2[%c0_2, %c0_3, %c0_4] : memref<1x8x128xf32, #tpu.memory_space<vmem>>, vector<1x8x128xf32>
    %5 = vector.shape_cast %4 : vector<1x8x128xf32> to vector<8x128xf32>
    %c0_5 = arith.constant 0 : index
    %c0_6 = arith.constant 0 : index
    %c0_7 = arith.constant 0 : index
    %6 = vector.load %arg3[%c0_5, %c0_6, %c0_7] : memref<1x8x128xf32, #tpu.memory_space<vmem>>, vector<1x8x128xf32>
    %7 = vector.shape_cast %6 : vector<1x8x128xf32> to vector<8x128xf32>
    %c0_8 = arith.constant 0 : index
    %c0_9 = arith.constant 0 : index
    %8 = vector.load %arg5[%c0_8, %c0_9] : memref<128x128xf32, #tpu.memory_space<vmem>>, vector<128x128xf32>
    %cst = arith.constant dense<0.000000e+00> : vector<8x128xf32>
    %9 = tpu.matmul %5, %8, %cst {dimension_numbers = #tpu.dot_dimension_numbers<[1], [0], [0], [1], [0, 0, 1, 1], [], []>} : vector<8x128xf32>, vector<128x128xf32>, vector<8x128xf32> -> vector<8x128xf32>
    %c0_10 = arith.constant 0 : index
    %c0_11 = arith.constant 0 : index
    %10 = vector.load %arg6[%c0_10, %c0_11] : memref<128x128xf32, #tpu.memory_space<vmem>>, vector<128x128xf32>
    %cst_12 = arith.constant dense<0.000000e+00> : vector<8x128xf32>
    %11 = tpu.matmul %7, %10, %cst_12 {dimension_numbers = #tpu.dot_dimension_numbers<[1], [0], [0], [1], [0, 0, 1, 1], [], []>} : vector<8x128xf32>, vector<128x128xf32>, vector<8x128xf32> -> vector<8x128xf32>
    %12 = arith.addf %9, %11 : vector<8x128xf32>
    %c0_13 = arith.constant 0 : index
    %c0_14 = arith.constant 0 : index
    %13 = vector.load %arg7[%c0_13, %c0_14] : memref<128x128xf32, #tpu.memory_space<vmem>>, vector<128x128xf32>
    %cst_15 = arith.constant dense<0.000000e+00> : vector<8x128xf32>
    %14 = tpu.matmul %3, %13, %cst_15 {dimension_numbers = #tpu.dot_dimension_numbers<[1], [0], [0], [1], [0, 0, 1, 1], [], []>} : vector<8x128xf32>, vector<128x128xf32>, vector<8x128xf32> -> vector<8x128xf32>
    %15 = arith.addf %12, %14 : vector<8x128xf32>
    %c0_16 = arith.constant 0 : index
    %c0_17 = arith.constant 0 : index
    %16 = vector.load %arg8[%c0_16, %c0_17] : memref<1x128xf32, #tpu.memory_space<vmem>>, vector<1x128xf32>
    %17 = vector.broadcast %16 : vector<1x128xf32> to vector<8x128xf32>
    %18 = arith.addf %15, %17 : vector<8x128xf32>
    %c0_18 = arith.constant 0 : index
    %c0_19 = arith.constant 0 : index
    %19 = vector.load %arg9[%c0_18, %c0_19] : memref<128x128xf32, #tpu.memory_space<vmem>>, vector<128x128xf32>
    %cst_20 = arith.constant dense<0.000000e+00> : vector<8x128xf32>
    %20 = tpu.matmul %5, %19, %cst_20 {dimension_numbers = #tpu.dot_dimension_numbers<[1], [0], [0], [1], [0, 0, 1, 1], [], []>} : vector<8x128xf32>, vector<128x128xf32>, vector<8x128xf32> -> vector<8x128xf32>
    %c0_21 = arith.constant 0 : index
    %c0_22 = arith.constant 0 : index
    %21 = vector.load %arg10[%c0_21, %c0_22] : memref<128x128xf32, #tpu.memory_space<vmem>>, vector<128x128xf32>
    %cst_23 = arith.constant dense<0.000000e+00> : vector<8x128xf32>
    %22 = tpu.matmul %7, %21, %cst_23 {dimension_numbers = #tpu.dot_dimension_numbers<[1], [0], [0], [1], [0, 0, 1, 1], [], []>} : vector<8x128xf32>, vector<128x128xf32>, vector<8x128xf32> -> vector<8x128xf32>
    %23 = arith.addf %20, %22 : vector<8x128xf32>
    %c0_24 = arith.constant 0 : index
    %c0_25 = arith.constant 0 : index
    %24 = vector.load %arg11[%c0_24, %c0_25] : memref<128x128xf32, #tpu.memory_space<vmem>>, vector<128x128xf32>
    %cst_26 = arith.constant dense<0.000000e+00> : vector<8x128xf32>
    %25 = tpu.matmul %3, %24, %cst_26 {dimension_numbers = #tpu.dot_dimension_numbers<[1], [0], [0], [1], [0, 0, 1, 1], [], []>} : vector<8x128xf32>, vector<128x128xf32>, vector<8x128xf32> -> vector<8x128xf32>
    %26 = arith.addf %23, %25 : vector<8x128xf32>
    %c0_27 = arith.constant 0 : index
    %c0_28 = arith.constant 0 : index
    %27 = vector.load %arg12[%c0_27, %c0_28] : memref<1x128xf32, #tpu.memory_space<vmem>>, vector<1x128xf32>
    %28 = vector.broadcast %27 : vector<1x128xf32> to vector<8x128xf32>
    %29 = arith.addf %26, %28 : vector<8x128xf32>
    %c0_29 = arith.constant 0 : index
    %c0_30 = arith.constant 0 : index
    %30 = vector.load %arg13[%c0_29, %c0_30] : memref<128x128xf32, #tpu.memory_space<vmem>>, vector<128x128xf32>
    %cst_31 = arith.constant dense<0.000000e+00> : vector<8x128xf32>
    %31 = tpu.matmul %18, %30, %cst_31 {dimension_numbers = #tpu.dot_dimension_numbers<[1], [0], [0], [1], [0, 0, 1, 1], [], []>} : vector<8x128xf32>, vector<128x128xf32>, vector<8x128xf32> -> vector<8x128xf32>
    %c0_32 = arith.constant 0 : index
    %c0_33 = arith.constant 0 : index
    %32 = vector.load %arg14[%c0_32, %c0_33] : memref<128x128xf32, #tpu.memory_space<vmem>>, vector<128x128xf32>
    %cst_34 = arith.constant dense<0.000000e+00> : vector<8x128xf32>
    %33 = tpu.matmul %29, %32, %cst_34 {dimension_numbers = #tpu.dot_dimension_numbers<[1], [0], [0], [1], [0, 0, 1, 1], [], []>} : vector<8x128xf32>, vector<128x128xf32>, vector<8x128xf32> -> vector<8x128xf32>
    %34 = arith.addf %31, %33 : vector<8x128xf32>
    %c0_35 = arith.constant 0 : index
    %c0_36 = arith.constant 0 : index
    %35 = vector.load %arg15[%c0_35, %c0_36] : memref<1x128xf32, #tpu.memory_space<vmem>>, vector<1x128xf32>
    %36 = vector.broadcast %35 : vector<1x128xf32> to vector<8x128xf32>
    %37 = arith.addf %34, %36 : vector<8x128xf32>
    %38 = tpu.iota {dimensions = array<i32: 1>} : vector<8x128xi32>
    %c16_i32 = arith.constant 16 : i32
    %39 = vector.broadcast %c16_i32 : i32 to vector<8x128xi32>
    %40 = arith.cmpi slt, %38, %39 : vector<8x128xi32>
    %cst_37 = arith.constant -1.000000e+30 : f32
    %41 = vector.broadcast %cst_37 : f32 to vector<8x128xf32>
    %42 = arith.select %40, %37, %41 : vector<8x128xi1>, vector<8x128xf32>
    %cst_38 = arith.constant dense<0xFF800000> : vector<8xf32>
    %43 = vector.multi_reduction <maximumf>, %42, %cst_38 [1] : vector<8x128xf32> to vector<8xf32>
    %44 = vector.shape_cast %43 : vector<8xf32> to vector<8x1xf32>
    %45 = vector.broadcast %44 : vector<8x1xf32> to vector<8x128xf32>
    %46 = arith.subf %42, %45 : vector<8x128xf32>
    %47 = math.exp %46 : vector<8x128xf32>
    %cst_39 = arith.constant dense<0.000000e+00> : vector<8xf32>
    %48 = vector.multi_reduction <add>, %47, %cst_39 [1] : vector<8x128xf32> to vector<8xf32>
    %49 = vector.shape_cast %48 : vector<8xf32> to vector<8x1xf32>
    %50 = math.log %49 : vector<8x1xf32>
    %51 = arith.addf %44, %50 : vector<8x1xf32>
    %52 = vector.broadcast %51 : vector<8x1xf32> to vector<8x128xf32>
    %53 = arith.subf %42, %52 : vector<8x128xf32>
    %c0_40 = arith.constant 0 : index
    %c0_41 = arith.constant 0 : index
    %c0_42 = arith.constant 0 : index
    %54 = vector.load %arg16[%c0_40, %c0_41, %c0_42] : memref<1x8x128xf32, #tpu.memory_space<vmem>>, vector<1x8x128xf32>
    %55 = vector.shape_cast %54 : vector<1x8x128xf32> to vector<8x128xf32>
    %56 = vector.shape_cast %53 : vector<8x128xf32> to vector<1x8x128xf32>
    tpu.vector_store %arg16[%c0_40, %c0_41, %c0_42], %56 {strides = array<i32>} : memref<1x8x128xf32, #tpu.memory_space<vmem>>, vector<1x8x128xf32>,
    %c0_43 = arith.constant 0 : index
    %c0_44 = arith.constant 0 : index
    %57 = vector.load %arg18[%c0_43, %c0_44] : memref<8x128xf32, #tpu.memory_space<vmem>>, vector<8x128xf32>
    tpu.vector_store %arg18[%c0_43, %c0_44], %18 {strides = array<i32>} : memref<8x128xf32, #tpu.memory_space<vmem>>, vector<8x128xf32>,
    %c0_45 = arith.constant 0 : index
    %c0_46 = arith.constant 0 : index
    %58 = vector.load %arg17[%c0_45, %c0_46] : memref<8x128xf32, #tpu.memory_space<vmem>>, vector<8x128xf32>
    tpu.vector_store %arg17[%c0_45, %c0_46], %18 {strides = array<i32>} : memref<8x128xf32, #tpu.memory_space<vmem>>, vector<8x128xf32>,
    return
  }
  func.func @transform_0(%arg0: i32, %arg1: i32) -> (i32, i32, i32) {
    %c0_i32 = arith.constant 0 : i32
    %c0_i32_0 = arith.constant 0 : i32
    return %arg1, %arg0, %c0_i32 : i32, i32, i32
  }
  func.func @transform_1(%arg0: i32, %arg1: i32) -> (i32, i32, i32) {
    %c0_i32 = arith.constant 0 : i32
    %c0_i32_0 = arith.constant 0 : i32
    return %arg1, %arg0, %c0_i32 : i32, i32, i32
  }
  func.func @transform_2(%arg0: i32, %arg1: i32) -> (i32, i32) {
    %c0_i32 = arith.constant 0 : i32
    %c0_i32_0 = arith.constant 0 : i32
    return %arg0, %c0_i32 : i32, i32
  }
  func.func @transform_3(%arg0: i32, %arg1: i32) -> (i32, i32) {
    %c0_i32 = arith.constant 0 : i32
    %c0_i32_0 = arith.constant 0 : i32
    %c0_i32_1 = arith.constant 0 : i32
    return %c0_i32, %c0_i32_0 : i32, i32
  }
  func.func @transform_4(%arg0: i32, %arg1: i32) -> (i32, i32) {
    %c0_i32 = arith.constant 0 : i32
    %c0_i32_0 = arith.constant 0 : i32
    %c0_i32_1 = arith.constant 0 : i32
    return %c0_i32, %c0_i32_0 : i32, i32
  }
  func.func @transform_5(%arg0: i32, %arg1: i32) -> (i32, i32) {
    %c0_i32 = arith.constant 0 : i32
    %c0_i32_0 = arith.constant 0 : i32
    %c0_i32_1 = arith.constant 0 : i32
    return %c0_i32, %c0_i32_0 : i32, i32
  }
  func.func @transform_6(%arg0: i32, %arg1: i32) -> (i32, i32) {
    %c0_i32 = arith.constant 0 : i32
    %c0_i32_0 = arith.constant 0 : i32
    %c0_i32_1 = arith.constant 0 : i32
    return %c0_i32, %c0_i32_0 : i32, i32
  }
  func.func @transform_7(%arg0: i32, %arg1: i32) -> (i32, i32) {
    %c0_i32 = arith.constant 0 : i32
    %c0_i32_0 = arith.constant 0 : i32
    %c0_i32_1 = arith.constant 0 : i32
    return %c0_i32, %c0_i32_0 : i32, i32
  }
  func.func @transform_8(%arg0: i32, %arg1: i32) -> (i32, i32) {
    %c0_i32 = arith.constant 0 : i32
    %c0_i32_0 = arith.constant 0 : i32
    %c0_i32_1 = arith.constant 0 : i32
    return %c0_i32, %c0_i32_0 : i32, i32
  }
  func.func @transform_9(%arg0: i32, %arg1: i32) -> (i32, i32) {
    %c0_i32 = arith.constant 0 : i32
    %c0_i32_0 = arith.constant 0 : i32
    %c0_i32_1 = arith.constant 0 : i32
    return %c0_i32, %c0_i32_0 : i32, i32
  }
  func.func @transform_10(%arg0: i32, %arg1: i32) -> (i32, i32) {
    %c0_i32 = arith.constant 0 : i32
    %c0_i32_0 = arith.constant 0 : i32
    %c0_i32_1 = arith.constant 0 : i32
    return %c0_i32, %c0_i32_0 : i32, i32
  }
  func.func @transform_11(%arg0: i32, %arg1: i32) -> (i32, i32) {
    %c0_i32 = arith.constant 0 : i32
    %c0_i32_0 = arith.constant 0 : i32
    %c0_i32_1 = arith.constant 0 : i32
    return %c0_i32, %c0_i32_0 : i32, i32
  }
  func.func @transform_12(%arg0: i32, %arg1: i32) -> (i32, i32) {
    %c0_i32 = arith.constant 0 : i32
    %c0_i32_0 = arith.constant 0 : i32
    %c0_i32_1 = arith.constant 0 : i32
    return %c0_i32, %c0_i32_0 : i32, i32
  }
  func.func @transform_13(%arg0: i32, %arg1: i32) -> (i32, i32) {
    %c0_i32 = arith.constant 0 : i32
    %c0_i32_0 = arith.constant 0 : i32
    %c0_i32_1 = arith.constant 0 : i32
    return %c0_i32, %c0_i32_0 : i32, i32
  }
  func.func @transform_14(%arg0: i32, %arg1: i32) -> (i32, i32, i32) {
    %c0_i32 = arith.constant 0 : i32
    %c0_i32_0 = arith.constant 0 : i32
    return %arg1, %arg0, %c0_i32 : i32, i32, i32
  }
  func.func @transform_15(%arg0: i32, %arg1: i32) -> (i32, i32) {
    %c0_i32 = arith.constant 0 : i32
    %c0_i32_0 = arith.constant 0 : i32
    return %arg0, %c0_i32 : i32, i32
  }
}

</mosaic_0001>

<llo_original>
// kernel: tpu_custom_call.1
$region0: #{tpu_custom_call.1}
  #allocation0 [shape = 'u32[]', space=smem, size = 0x4, offset = 0x4, fixed_abs, tag = 'smem constant byte address 0x4 - core index']
  #allocation1 [shape = 'u32[144,128]{1,0:T(1,128)}', space=vmem, size = 0x12000, scoped, tag = 'internal scratch']
  #allocation2 [shape = 'f32[8,128]{1,0:T(8,128)}', space=vmem, size = 0x1000, scoped, tag = 'scratch operand']
  %s0 = inlined_call_operand.hbm [shape: f32[8,8,128], index: 0, kind: input, shape index: {}]
  %s1 = inlined_call_operand.hbm [shape: f32[8,8,128], index: 1, kind: input, shape index: {}]
  %s2 = inlined_call_operand.hbm [shape: f32[8,128], index: 2, kind: input, shape index: {}]
  %s3 = inlined_call_operand.hbm [shape: f32[128,128], index: 3, kind: input, shape index: {}]
  %s4 = inlined_call_operand.hbm [shape: f32[128,128], index: 4, kind: input, shape index: {}]
  %s5 = inlined_call_operand.hbm [shape: f32[128,128], index: 5, kind: input, shape index: {}]
  %s6 = inlined_call_operand.vmem [shape: f32[1,128], index: 6, kind: input, shape index: {}]
  %s7 = inlined_call_operand.hbm [shape: f32[128,128], index: 7, kind: input, shape index: {}]
  %s8 = inlined_call_operand.hbm [shape: f32[128,128], index: 8, kind: input, shape index: {}]
  %s9 = inlined_call_operand.hbm [shape: f32[128,128], index: 9, kind: input, shape index: {}]
  %s10 = inlined_call_operand.vmem [shape: f32[1,128], index: 10, kind: input, shape index: {}]
  %s11 = inlined_call_operand.hbm [shape: f32[128,128], index: 11, kind: input, shape index: {}]
  %s12 = inlined_call_operand.hbm [shape: f32[128,128], index: 12, kind: input, shape index: {}]
  %s13 = inlined_call_operand.vmem [shape: f32[1,128], index: 13, kind: input, shape index: {}]
  %s14 = inlined_call_operand.hbm [shape: f32[8,8,128], index: 14, kind: output, shape index: {0}]
  %s15 = inlined_call_operand.hbm [shape: f32[8,128], index: 15, kind: output, shape index: {1}]
  %16 = xla_tuple %s14, %s15
  %s17 = sld [smem:[#allocation0]]
  $region145: #{tpu_custom_call.1} parent=0
    _
  %s19 = ssub.s32 1, %s17
  %s20 = scalar_select 0, %s19, %s17
  $region1: #{tpu_custom_call.1} parent=0
    #allocation3 [shape = 'u8[8192]{0}', space=vmem, size = 0x2000, scoped, tag = 'input window, operand 0']
    #allocation4 [shape = 's32[2]{0}', space=sflag, size = 0x8, scoped, tag = 'scoped memory for tpu_custom_call.1']
    #allocation5 [shape = 's32[2]{0}', space=sflag, size = 0x8, scoped, tag = 'scoped memory for tpu_custom_call.1']
    #allocation6 [shape = 'u8[8192]{0}', space=vmem, size = 0x2000, scoped, tag = 'input window, operand 1']
    #allocation7 [shape = 's32[2]{0}', space=sflag, size = 0x8, scoped, tag = 'scoped memory for tpu_custom_call.1']
    #allocation8 [shape = 'u8[4096]{0}', space=vmem, size = 0x1000, scoped, tag = 'input window, operand 2, single buffered']
    #allocation9 [shape = 'u8[65536]{0}', space=vmem, size = 0x10000, scoped, tag = 'input window, operand 3, single buffered']
    #allocation10 [shape = 's32[1]{0}', space=sflag, size = 0x4, scoped, tag = 'scoped memory for tpu_custom_call.1']
    #allocation11 [shape = 'u8[65536]{0}', space=vmem, size = 0x10000, scoped, tag = 'input window, operand 4, single buffered']
    #allocation12 [shape = 'u8[65536]{0}', space=vmem, size = 0x10000, scoped, tag = 'input window, operand 5, single buffered']
    #allocation13 [shape = 's32[1]{0}', space=sflag, size = 0x4, scoped, tag = 'scoped memory for tpu_custom_call.1']
    #allocation14 [shape = 'u8[65536]{0}', space=vmem, size = 0x10000, scoped, tag = 'input window, operand 7, single buffered']
    #allocation15 [shape = 'u8[65536]{0}', space=vmem, size = 0x10000, scoped, tag = 'input window, operand 8, single buffered']
    #allocation16 [shape = 's32[1]{0}', space=sflag, size = 0x4, scoped, tag = 'scoped memory for tpu_custom_call.1']
    #allocation17 [shape = 'u8[65536]{0}', space=vmem, size = 0x10000, scoped, tag = 'input window, operand 9, single buffered']
    #allocation18 [shape = 'u8[65536]{0}', space=vmem, size = 0x10000, scoped, tag = 'input window, operand 11, single buffered']
    #allocation19 [shape = 's32[1]{0}', space=sflag, size = 0x4, scoped, tag = 'scoped memory for tpu_custom_call.1']
    #allocation20 [shape = 'u8[65536]{0}', space=vmem, size = 0x10000, scoped, tag = 'input window, operand 12, single buffered']
    #allocation21 [shape = 'u8[8192]{0}', space=vmem, size = 0x2000, scoped, tag = 'output window, operand 0']
    #allocation22 [shape = 'u8[4096]{0}', space=vmem, size = 0x1000, scoped, tag = 'output window, operand 1, single buffered']
    #allocation23 [shape = 's32[1]{0}', space=sflag, size = 0x4, scoped, tag = 'scoped memory for tpu_custom_call.1']
    %21 = vsyncpa [#allocation4], 0
    %s22 = scalar_lea.sflag [#allocation4], 1
    %23 = vsyncpa %s22, 0
    %24 = vsyncpa [#allocation7], 0
    %s25 = scalar_lea.sflag [#allocation7], 1
    %26 = vsyncpa %s25, 0
    %27 = vsyncpa [#allocation10], 0
    %28 = vsyncpa [#allocation13], 0
    %29 = vsyncpa [#allocation16], 0
    %30 = vsyncpa [#allocation19], 0
    %31 = vsyncpa [#allocation5], 0
    %s32 = scalar_lea.sflag [#allocation5], 1
    %33 = vsyncpa %s32, 0
    %34 = vsyncpa [#allocation23], 0
    loop: start=0, step=1, limit=10
    $region2: #{tpu_custom_call.1} parent=1 // loop_pre_header
      _
    $region3: #{tpu_custom_call.1} parent=1 // loop_header
      %s36 = sphi 0, %s40
      %p37 = scmp.ge.s32.totalorder %s36, 10
      %s43 = sphi 0, %s55
      %s44 = sphi 0, %s51
      %s45 = sphi 0, %s43
      %s46 = sphi 0, %s44
      %s47 = sphi 0, %s45
      %s48 = sphi 0, %s46
      %s60 = sphi 0, %s62
      %s63 = sphi 0, %s60
      %s64 = sphi 0, %s63
      %s80 = sphi 0, %s64
      %s88 = sphi 0, %s90
      %s91 = sphi 0, %s88
      %s92 = sphi 0, %s91
      %s108 = sphi 0, %s92
      %s114 = sphi 0, %s116
      %s117 = sphi 0, %s114
      %s118 = sphi 0, %s117
      %s134 = sphi 0, %s118
      %s138 = sphi 0, %s138
      %s140 = sphi 0, %s138
      %s141 = sphi 0, %s140
      %s155 = sphi 0, %s141
      %s159 = sphi 0, %s159
      %s161 = sphi 0, %s159
      %s162 = sphi 0, %s161
      %s176 = sphi 0, %s162
      %s180 = sphi 0, %s180
      %s182 = sphi 0, %s180
      %s183 = sphi 0, %s182
      %s197 = sphi 0, %s183
      %s201 = sphi 0, %s201
      %s203 = sphi 0, %s201
      %s204 = sphi 0, %s203
      %s218 = sphi 0, %s204
      %s222 = sphi 0, %s222
      %s224 = sphi 0, %s222
      %s225 = sphi 0, %s224
      %s239 = sphi 0, %s225
      %s243 = sphi 0, %s243
      %s245 = sphi 0, %s243
      %s246 = sphi 0, %s245
      %s260 = sphi 0, %s246
      %s264 = sphi 0, %s264
      %s266 = sphi 0, %s264
      %s267 = sphi 0, %s266
      %s281 = sphi 0, %s267
      %s285 = sphi 0, %s285
      %s287 = sphi 0, %s285
      %s288 = sphi 0, %s287
      %s302 = sphi 0, %s288
      %s306 = sphi 0, %s306
      %s308 = sphi 0, %s306
      %s309 = sphi 0, %s308
      %s323 = sphi 0, %s309
      %s327 = sphi 0, %s327
      %s329 = sphi 0, %s327
      %s330 = sphi 0, %s329
      %s344 = sphi 0, %s330
      %s348 = sphi 0, %s348
      %s350 = sphi 0, %s348
      %s351 = sphi 0, %s350
      %s365 = sphi 0, %s351
      %s373 = sphi 0, %s375
      %s376 = sphi 0, %s373
      %s377 = sphi 0, %s376
      %s393 = sphi 0, %s377
      %s399 = sphi 0, %s401
      %s402 = sphi 0, %s399
      %s403 = sphi 0, %s402
      %s419 = sphi 0, %s403
    $region4: #{tpu_custom_call.1} parent=1 // loop_header_branch
      %39 = sbr.rel (%p37) target = $region8
    $region5: #{tpu_custom_call.1} parent=1 // loop_body
      %s41 = ssub.s32 %s36, 1
      %s42 = ssub.s32 %s36, 2
      %s49 = sadd.s32 1, %s44
      %p50 = scmp.ge.s32.totalorder %s49, 8
      %s51 = scalar_select %p50, 0, %s49
      %s52 = sadd.s32 1, %s43
      %s53 = scalar_select %p50, %s52, %s43
      %p54 = scmp.ge.s32.totalorder %s53, 1
      %s55 = scalar_select %p54, 0, %s53
      %s56 = ssub.s32 %s44, %s51
      %s57 = ssub.s32 %s43, %s55
      %s58 = sor.u32 %s56, %s57
      %p59 = scmp.eq.s32.totalorder %s58, 0
      %s61 = sadd.s32 %s60, 1
      %s62 = scalar_select %p59, %s60, %s61
      %p65 = pneg %p59
      %p66 = scmp.eq.s32.totalorder %s36, 7
      %p67 = por %p65, %p66
      %p68 = scmp.ne.s32.totalorder %s60, %s63
      %p69 = scmp.eq.s32.totalorder %s36, 0
      %p70 = por %p68, %p69
      %p71 = scmp.ne.s32.totalorder %s60, %s63
      %p72 = scmp.eq.s32.totalorder %s41, 7
      %p73 = por %p71, %p72
      %p74 = scmp.ne.s32.totalorder %s63, %s64
      %p75 = scmp.eq.s32.totalorder %s41, 0
      %p76 = por %p74, %p75
      %p77 = scmp.ne.s32.totalorder %s63, %s64
      %p78 = scmp.eq.s32.totalorder %s42, 7
      %p79 = por %p77, %p78
      %p81 = scmp.ne.s32.totalorder %s64, %s80
      %p82 = scmp.eq.s32.totalorder %s42, 0
      %p83 = por %p81, %p82
      %s84 = ssub.s32 %s44, %s51
      %s85 = ssub.s32 %s43, %s55
      %s86 = sor.u32 %s84, %s85
      %p87 = scmp.eq.s32.totalorder %s86, 0
      %s89 = sadd.s32 %s88, 1
      %s90 = scalar_select %p87, %s88, %s89
      %p93 = pneg %p87
      %p94 = scmp.eq.s32.totalorder %s36, 7
      %p95 = por %p93, %p94
      %p96 = scmp.ne.s32.totalorder %s88, %s91
      %p97 = scmp.eq.s32.totalorder %s36, 0
      %p98 = por %p96, %p97
      %p99 = scmp.ne.s32.totalorder %s88, %s91
      %p100 = scmp.eq.s32.totalorder %s41, 7
      %p101 = por %p99, %p100
      %p102 = scmp.ne.s32.totalorder %s91, %s92
      %p103 = scmp.eq.s32.totalorder %s41, 0
      %p104 = por %p102, %p103
      %p105 = scmp.ne.s32.totalorder %s91, %s92
      %p106 = scmp.eq.s32.totalorder %s42, 7
      %p107 = por %p105, %p106
      %p109 = scmp.ne.s32.totalorder %s92, %s108
      %p110 = scmp.eq.s32.totalorder %s42, 0
      %p111 = por %p109, %p110
      %s112 = ssub.s32 %s43, %s55
      %p113 = scmp.eq.s32.totalorder %s112, 0
      %s115 = sadd.s32 %s114, 1
      %s116 = scalar_select %p113, %s114, %s115
      %p119 = pneg %p113
      %p120 = scmp.eq.s32.totalorder %s36, 7
      %p121 = por %p119, %p120
      %p122 = scmp.ne.s32.totalorder %s114, %s117
      %p123 = scmp.eq.s32.totalorder %s36, 0
      %p124 = por %p122, %p123
      %p125 = scmp.ne.s32.totalorder %s114, %s117
      %p126 = scmp.eq.s32.totalorder %s41, 7
      %p127 = por %p125, %p126
      %p128 = scmp.ne.s32.totalorder %s117, %s118
      %p129 = scmp.eq.s32.totalorder %s41, 0
      %p130 = por %p128, %p129
      %p131 = scmp.ne.s32.totalorder %s117, %s118
      %p132 = scmp.eq.s32.totalorder %s42, 7
      %p133 = por %p131, %p132
      %p135 = scmp.ne.s32.totalorder %s118, %s134
      %p136 = scmp.eq.s32.totalorder %s42, 0
      %p137 = por %p135, %p136
      %s139 = sadd.s32 %s138, 1
      %p142 = scmp.eq.s32.totalorder %s36, 7
      %p143 = scmp.ne.s32.totalorder %s138, %s140
      %p144 = scmp.eq.s32.totalorder %s36, 0
      %p145 = por %p143, %p144
      %p146 = scmp.ne.s32.totalorder %s138, %s140
      %p147 = scmp.eq.s32.totalorder %s41, 7
      %p148 = por %p146, %p147
      %p149 = scmp.ne.s32.totalorder %s140, %s141
      %p150 = scmp.eq.s32.totalorder %s41, 0
      %p151 = por %p149, %p150
      %p152 = scmp.ne.s32.totalorder %s140, %s141
      %p153 = scmp.eq.s32.totalorder %s42, 7
      %p154 = por %p152, %p153
      %p156 = scmp.ne.s32.totalorder %s141, %s155
      %p157 = scmp.eq.s32.totalorder %s42, 0
      %p158 = por %p156, %p157
      %s160 = sadd.s32 %s159, 1
      %p163 = scmp.eq.s32.totalorder %s36, 7
      %p164 = scmp.ne.s32.totalorder %s159, %s161
      %p165 = scmp.eq.s32.totalorder %s36, 0
      %p166 = por %p164, %p165
      %p167 = scmp.ne.s32.totalorder %s159, %s161
      %p168 = scmp.eq.s32.totalorder %s41, 7
      %p169 = por %p167, %p168
      %p170 = scmp.ne.s32.totalorder %s161, %s162
      %p171 = scmp.eq.s32.totalorder %s41, 0
      %p172 = por %p170, %p171
      %p173 = scmp.ne.s32.totalorder %s161, %s162
      %p174 = scmp.eq.s32.totalorder %s42, 7
      %p175 = por %p173, %p174
      %p177 = scmp.ne.s32.totalorder %s162, %s176
      %p178 = scmp.eq.s32.totalorder %s42, 0
      %p179 = por %p177, %p178
      %s181 = sadd.s32 %s180, 1
      %p184 = scmp.eq.s32.totalorder %s36, 7
      %p185 = scmp.ne.s32.totalorder %s180, %s182
      %p186 = scmp.eq.s32.totalorder %s36, 0
      %p187 = por %p185, %p186
      %p188 = scmp.ne.s32.totalorder %s180, %s182
      %p189 = scmp.eq.s32.totalorder %s41, 7
      %p190 = por %p188, %p189
      %p191 = scmp.ne.s32.totalorder %s182, %s183
      %p192 = scmp.eq.s32.totalorder %s41, 0
      %p193 = por %p191, %p192
      %p194 = scmp.ne.s32.totalorder %s182, %s183
      %p195 = scmp.eq.s32.totalorder %s42, 7
      %p196 = por %p194, %p195
      %p198 = scmp.ne.s32.totalorder %s183, %s197
      %p199 = scmp.eq.s32.totalorder %s42, 0
      %p200 = por %p198, %p199
      %s202 = sadd.s32 %s201, 1
      %p205 = scmp.eq.s32.totalorder %s36, 7
      %p206 = scmp.ne.s32.totalorder %s201, %s203
      %p207 = scmp.eq.s32.totalorder %s36, 0
      %p208 = por %p206, %p207
      %p209 = scmp.ne.s32.totalorder %s201, %s203
      %p210 = scmp.eq.s32.totalorder %s41, 7
      %p211 = por %p209, %p210
      %p212 = scmp.ne.s32.totalorder %s203, %s204
      %p213 = scmp.eq.s32.totalorder %s41, 0
      %p214 = por %p212, %p213
      %p215 = scmp.ne.s32.totalorder %s203, %s204
      %p216 = scmp.eq.s32.totalorder %s42, 7
      %p217 = por %p215, %p216
      %p219 = scmp.ne.s32.totalorder %s204, %s218
      %p220 = scmp.eq.s32.totalorder %s42, 0
      %p221 = por %p219, %p220
      %s223 = sadd.s32 %s222, 1
      %p226 = scmp.eq.s32.totalorder %s36, 7
      %p227 = scmp.ne.s32.totalorder %s222, %s224
      %p228 = scmp.eq.s32.totalorder %s36, 0
      %p229 = por %p227, %p228
      %p230 = scmp.ne.s32.totalorder %s222, %s224
      %p231 = scmp.eq.s32.totalorder %s41, 7
      %p232 = por %p230, %p231
      %p233 = scmp.ne.s32.totalorder %s224, %s225
      %p234 = scmp.eq.s32.totalorder %s41, 0
      %p235 = por %p233, %p234
      %p236 = scmp.ne.s32.totalorder %s224, %s225
      %p237 = scmp.eq.s32.totalorder %s42, 7
      %p238 = por %p236, %p237
      %p240 = scmp.ne.s32.totalorder %s225, %s239
      %p241 = scmp.eq.s32.totalorder %s42, 0
      %p242 = por %p240, %p241
      %s244 = sadd.s32 %s243, 1
      %p247 = scmp.eq.s32.totalorder %s36, 7
      %p248 = scmp.ne.s32.totalorder %s243, %s245
      %p249 = scmp.eq.s32.totalorder %s36, 0
      %p250 = por %p248, %p249
      %p251 = scmp.ne.s32.totalorder %s243, %s245
      %p252 = scmp.eq.s32.totalorder %s41, 7
      %p253 = por %p251, %p252
      %p254 = scmp.ne.s32.totalorder %s245, %s246
      %p255 = scmp.eq.s32.totalorder %s41, 0
      %p256 = por %p254, %p255
      %p257 = scmp.ne.s32.totalorder %s245, %s246
      %p258 = scmp.eq.s32.totalorder %s42, 7
      %p259 = por %p257, %p258
      %p261 = scmp.ne.s32.totalorder %s246, %s260
      %p262 = scmp.eq.s32.totalorder %s42, 0
      %p263 = por %p261, %p262
      %s265 = sadd.s32 %s264, 1
      %p268 = scmp.eq.s32.totalorder %s36, 7
      %p269 = scmp.ne.s32.totalorder %s264, %s266
      %p270 = scmp.eq.s32.totalorder %s36, 0
      %p271 = por %p269, %p270
      %p272 = scmp.ne.s32.totalorder %s264, %s266
      %p273 = scmp.eq.s32.totalorder %s41, 7
      %p274 = por %p272, %p273
      %p275 = scmp.ne.s32.totalorder %s266, %s267
      %p276 = scmp.eq.s32.totalorder %s41, 0
      %p277 = por %p275, %p276
      %p278 = scmp.ne.s32.totalorder %s266, %s267
      %p279 = scmp.eq.s32.totalorder %s42, 7
      %p280 = por %p278, %p279
      %p282 = scmp.ne.s32.totalorder %s267, %s281
      %p283 = scmp.eq.s32.totalorder %s42, 0
      %p284 = por %p282, %p283
      %s286 = sadd.s32 %s285, 1
      %p289 = scmp.eq.s32.totalorder %s36, 7
      %p290 = scmp.ne.s32.totalorder %s285, %s287
      %p291 = scmp.eq.s32.totalorder %s36, 0
      %p292 = por %p290, %p291
      %p293 = scmp.ne.s32.totalorder %s285, %s287
      %p294 = scmp.eq.s32.totalorder %s41, 7
      %p295 = por %p293, %p294
      %p296 = scmp.ne.s32.totalorder %s287, %s288
      %p297 = scmp.eq.s32.totalorder %s41, 0
      %p298 = por %p296, %p297
      %p299 = scmp.ne.s32.totalorder %s287, %s288
      %p300 = scmp.eq.s32.totalorder %s42, 7
      %p301 = por %p299, %p300
      %p303 = scmp.ne.s32.totalorder %s288, %s302
      %p304 = scmp.eq.s32.totalorder %s42, 0
      %p305 = por %p303, %p304
      %s307 = sadd.s32 %s306, 1
      %p310 = scmp.eq.s32.totalorder %s36, 7
      %p311 = scmp.ne.s32.totalorder %s306, %s308
      %p312 = scmp.eq.s32.totalorder %s36, 0
      %p313 = por %p311, %p312
      %p314 = scmp.ne.s32.totalorder %s306, %s308
      %p315 = scmp.eq.s32.totalorder %s41, 7
      %p316 = por %p314, %p315
      %p317 = scmp.ne.s32.totalorder %s308, %s309
      %p318 = scmp.eq.s32.totalorder %s41, 0
      %p319 = por %p317, %p318
      %p320 = scmp.ne.s32.totalorder %s308, %s309
      %p321 = scmp.eq.s32.totalorder %s42, 7
      %p322 = por %p320, %p321
      %p324 = scmp.ne.s32.totalorder %s309, %s323
      %p325 = scmp.eq.s32.totalorder %s42, 0
      %p326 = por %p324, %p325
      %s328 = sadd.s32 %s327, 1
      %p331 = scmp.eq.s32.totalorder %s36, 7
      %p332 = scmp.ne.s32.totalorder %s327, %s329
      %p333 = scmp.eq.s32.totalorder %s36, 0
      %p334 = por %p332, %p333
      %p335 = scmp.ne.s32.totalorder %s327, %s329
      %p336 = scmp.eq.s32.totalorder %s41, 7
      %p337 = por %p335, %p336
      %p338 = scmp.ne.s32.totalorder %s329, %s330
      %p339 = scmp.eq.s32.totalorder %s41, 0
      %p340 = por %p338, %p339
      %p341 = scmp.ne.s32.totalorder %s329, %s330
      %p342 = scmp.eq.s32.totalorder %s42, 7
      %p343 = por %p341, %p342
      %p345 = scmp.ne.s32.totalorder %s330, %s344
      %p346 = scmp.eq.s32.totalorder %s42, 0
      %p347 = por %p345, %p346
      %s349 = sadd.s32 %s348, 1
      %p352 = scmp.eq.s32.totalorder %s36, 7
      %p353 = scmp.ne.s32.totalorder %s348, %s350
      %p354 = scmp.eq.s32.totalorder %s36, 0
      %p355 = por %p353, %p354
      %p356 = scmp.ne.s32.totalorder %s348, %s350
      %p357 = scmp.eq.s32.totalorder %s41, 7
      %p358 = por %p356, %p357
      %p359 = scmp.ne.s32.totalorder %s350, %s351
      %p360 = scmp.eq.s32.totalorder %s41, 0
      %p361 = por %p359, %p360
      %p362 = scmp.ne.s32.totalorder %s350, %s351
      %p363 = scmp.eq.s32.totalorder %s42, 7
      %p364 = por %p362, %p363
      %p366 = scmp.ne.s32.totalorder %s351, %s365
      %p367 = scmp.eq.s32.totalorder %s42, 0
      %p368 = por %p366, %p367
      %s369 = ssub.s32 %s44, %s51
      %s370 = ssub.s32 %s43, %s55
      %s371 = sor.u32 %s369, %s370
      %p372 = scmp.eq.s32.totalorder %s371, 0
      %s374 = sadd.s32 %s373, 1
      %s375 = scalar_select %p372, %s373, %s374
      %p378 = pneg %p372
      %p379 = scmp.eq.s32.totalorder %s36, 7
      %p380 = por %p378, %p379
      %p381 = scmp.ne.s32.totalorder %s373, %s376
      %p382 = scmp.eq.s32.totalorder %s36, 0
      %p383 = por %p381, %p382
      %p384 = scmp.ne.s32.totalorder %s373, %s376
      %p385 = scmp.eq.s32.totalorder %s41, 7
      %p386 = por %p384, %p385
      %p387 = scmp.ne.s32.totalorder %s376, %s377
      %p388 = scmp.eq.s32.totalorder %s41, 0
      %p389 = por %p387, %p388
      %p390 = scmp.ne.s32.totalorder %s376, %s377
      %p391 = scmp.eq.s32.totalorder %s42, 7
      %p392 = por %p390, %p391
      %p394 = scmp.ne.s32.totalorder %s377, %s393
      %p395 = scmp.eq.s32.totalorder %s42, 0
      %p396 = por %p394, %p395
      %s397 = ssub.s32 %s43, %s55
      %p398 = scmp.eq.s32.totalorder %s397, 0
      %s400 = sadd.s32 %s399, 1
      %s401 = scalar_select %p398, %s399, %s400
      %p404 = pneg %p398
      %p405 = scmp.eq.s32.totalorder %s36, 7
      %p406 = por %p404, %p405
      %p407 = scmp.ne.s32.totalorder %s399, %s402
      %p408 = scmp.eq.s32.totalorder %s36, 0
      %p409 = por %p407, %p408
      %p410 = scmp.ne.s32.totalorder %s399, %s402
      %p411 = scmp.eq.s32.totalorder %s41, 7
      %p412 = por %p410, %p411
      %p413 = scmp.ne.s32.totalorder %s402, %s403
      %p414 = scmp.eq.s32.totalorder %s41, 0
      %p415 = por %p413, %p414
      %p416 = scmp.ne.s32.totalorder %s402, %s403
      %p417 = scmp.eq.s32.totalorder %s42, 7
      %p418 = por %p416, %p417
      %p420 = scmp.ne.s32.totalorder %s403, %s419
      %p421 = scmp.eq.s32.totalorder %s42, 0
      %p422 = por %p420, %p421
      %p423 = scmp.le.s32.totalorder 1, %s36
      %p424 = scmp.lt.s32.totalorder %s36, 9
      %p425 = pnand %p423, %p424
      %p426 = pneg %p425
      // Predicated region
      $region9: #{tpu_custom_call.1} parent=5 // pred_check
        _
      $region10: #{tpu_custom_call.1} parent=5 // pred_check_branch
        %428 = sbr.rel (%p425) target = $region12
      $region11: #{tpu_custom_call.1} parent=5 // pred_region
        %s429 = ssub.s32 %s36, 1
        // Predicated region
        $region13: #{tpu_custom_call.1} parent=11 // pred_check
          %p430 = pneg %p130
        $region14: #{tpu_custom_call.1} parent=11 // pred_check_branch
          %432 = sbr.rel (%p430) target = $region16
        $region15: #{tpu_custom_call.1} parent=11 // pred_region
          %s434 = ssub.s32 128, 128
          %435 = vsyncadd [#allocation7], %s434
          %s436 = smul.addr %s45, 128
          %s437 = scalar_lea.hbm %s2, %s436
          %s439 = sshll.u32 [#allocation8], 4
          %s440 = int_to_ptr.vmem [resolvable:$true] %s439
          %442 = dma.hbm_to_vmem [thread:$0]  %s437, 128, %s440, [#allocation7]
        $region16: #{tpu_custom_call.1} parent=11 // pred_fallthru
          _
        // Predicated region
        $region17: #{tpu_custom_call.1} parent=11 // pred_check
          %p443 = pneg %p151
        $region18: #{tpu_custom_call.1} parent=11 // pred_check_branch
          %445 = sbr.rel (%p443) target = $region20
        $region19: #{tpu_custom_call.1} parent=11 // pred_region
          %s447 = ssub.s32 2048, 2048
          %448 = vsyncadd [#allocation10], %s447
          %s449 = sshll.u32 [#allocation9], 4
          %s450 = int_to_ptr.vmem [resolvable:$true] %s449
          %455 = dma.hbm_to_vmem [thread:$0]  %s3, 2048, %s450, [#allocation10], 128, 128, 8
        $region20: #{tpu_custom_call.1} parent=11 // pred_fallthru
          _
        // Predicated region
        $region21: #{tpu_custom_call.1} parent=11 // pred_check
          %p456 = pneg %p172
        $region22: #{tpu_custom_call.1} parent=11 // pred_check_branch
          %458 = sbr.rel (%p456) target = $region24
        $region23: #{tpu_custom_call.1} parent=11 // pred_region
          %s460 = ssub.s32 2048, 2048
          %461 = vsyncadd [#allocation10], %s460
          %s462 = sshll.u32 [#allocation11], 4
          %s463 = int_to_ptr.vmem [resolvable:$true] %s462
          %468 = dma.hbm_to_vmem [thread:$0]  %s4, 2048, %s463, [#allocation10], 128, 128, 8
        $region24: #{tpu_custom_call.1} parent=11 // pred_fallthru
          _
        // Predicated region
        $region25: #{tpu_custom_call.1} parent=11 // pred_check
          %p469 = pneg %p193
        $region26: #{tpu_custom_call.1} parent=11 // pred_check_branch
          %471 = sbr.rel (%p469) target = $region28
        $region27: #{tpu_custom_call.1} parent=11 // pred_region
          %s473 = ssub.s32 2048, 2048
          %474 = vsyncadd [#allocation13], %s473
          %s475 = sshll.u32 [#allocation12], 4
          %s476 = int_to_ptr.vmem [resolvable:$true] %s475
          %481 = dma.hbm_to_vmem [thread:$0]  %s5, 2048, %s476, [#allocation13], 128, 128, 8
        $region28: #{tpu_custom_call.1} parent=11 // pred_fallthru
          _
        // Predicated region
        $region29: #{tpu_custom_call.1} parent=11 // pred_check
          %p482 = pneg %p214
        $region30: #{tpu_custom_call.1} parent=11 // pred_check_branch
          %484 = sbr.rel (%p482) target = $region32
        $region31: #{tpu_custom_call.1} parent=11 // pred_region
          _
        $region32: #{tpu_custom_call.1} parent=11 // pred_fallthru
          _
        // Predicated region
        $region33: #{tpu_custom_call.1} parent=11 // pred_check
          %p485 = pneg %p235
        $region34: #{tpu_custom_call.1} parent=11 // pred_check_branch
          %487 = sbr.rel (%p485) target = $region36
        $region35: #{tpu_custom_call.1} parent=11 // pred_region
          %s489 = ssub.s32 2048, 2048
          %490 = vsyncadd [#allocation13], %s489
          %s491 = sshll.u32 [#allocation14], 4
          %s492 = int_to_ptr.vmem [resolvable:$true] %s491
          %497 = dma.hbm_to_vmem [thread:$0]  %s7, 2048, %s492, [#allocation13], 128, 128, 8
        $region36: #{tpu_custom_call.1} parent=11 // pred_fallthru
          _
        // Predicated region
        $region37: #{tpu_custom_call.1} parent=11 // pred_check
          %p498 = pneg %p256
        $region38: #{tpu_custom_call.1} parent=11 // pred_check_branch
          %500 = sbr.rel (%p498) target = $region40
        $region39: #{tpu_custom_call.1} parent=11 // pred_region
          %s502 = ssub.s32 2048, 2048
          %503 = vsyncadd [#allocation16], %s502
          %s504 = sshll.u32 [#allocation15], 4
          %s505 = int_to_ptr.vmem [resolvable:$true] %s504
          %510 = dma.hbm_to_vmem [thread:$0]  %s8, 2048, %s505, [#allocation16], 128, 128, 8
        $region40: #{tpu_custom_call.1} parent=11 // pred_fallthru
          _
        // Predicated region
        $region41: #{tpu_custom_call.1} parent=11 // pred_check
          %p511 = pneg %p277
        $region42: #{tpu_custom_call.1} parent=11 // pred_check_branch
          %513 = sbr.rel (%p511) target = $region44
        $region43: #{tpu_custom_call.1} parent=11 // pred_region
          %s515 = ssub.s32 2048, 2048
          %516 = vsyncadd [#allocation16], %s515
          %s517 = sshll.u32 [#allocation17], 4
          %s518 = int_to_ptr.vmem [resolvable:$true] %s517
          %523 = dma.hbm_to_vmem [thread:$0]  %s9, 2048, %s518, [#allocation16], 128, 128, 8
        $region44: #{tpu_custom_call.1} parent=11 // pred_fallthru
          _
        // Predicated region
        $region45: #{tpu_custom_call.1} parent=11 // pred_check
          %p524 = pneg %p298
        $region46: #{tpu_custom_call.1} parent=11 // pred_check_branch
          %526 = sbr.rel (%p524) target = $region48
        $region47: #{tpu_custom_call.1} parent=11 // pred_region
          _
        $region48: #{tpu_custom_call.1} parent=11 // pred_fallthru
          _
        // Predicated region
        $region49: #{tpu_custom_call.1} parent=11 // pred_check
          %p527 = pneg %p319
        $region50: #{tpu_custom_call.1} parent=11 // pred_check_branch
          %529 = sbr.rel (%p527) target = $region52
        $region51: #{tpu_custom_call.1} parent=11 // pred_region
          %s531 = ssub.s32 2048, 2048
          %532 = vsyncadd [#allocation19], %s531
          %s533 = sshll.u32 [#allocation18], 4
          %s534 = int_to_ptr.vmem [resolvable:$true] %s533
          %539 = dma.hbm_to_vmem [thread:$0]  %s11, 2048, %s534, [#allocation19], 128, 128, 8
        $region52: #{tpu_custom_call.1} parent=11 // pred_fallthru
          _
        // Predicated region
        $region53: #{tpu_custom_call.1} parent=11 // pred_check
          %p540 = pneg %p340
        $region54: #{tpu_custom_call.1} parent=11 // pred_check_branch
          %542 = sbr.rel (%p540) target = $region56
        $region55: #{tpu_custom_call.1} parent=11 // pred_region
          %s544 = ssub.s32 2048, 2048
          %545 = vsyncadd [#allocation19], %s544
          %s546 = sshll.u32 [#allocation20], 4
          %s547 = int_to_ptr.vmem [resolvable:$true] %s546
          %552 = dma.hbm_to_vmem [thread:$0]  %s12, 2048, %s547, [#allocation19], 128, 128, 8
        $region56: #{tpu_custom_call.1} parent=11 // pred_fallthru
          _
        // Predicated region
        $region57: #{tpu_custom_call.1} parent=11 // pred_check
          %p553 = pneg %p361
        $region58: #{tpu_custom_call.1} parent=11 // pred_check_branch
          %555 = sbr.rel (%p553) target = $region60
        $region59: #{tpu_custom_call.1} parent=11 // pred_region
          _
        $region60: #{tpu_custom_call.1} parent=11 // pred_fallthru
          _
      $region12: #{tpu_custom_call.1} parent=5 // pred_fallthru
        _
      %p556 = scmp.lt.s32.totalorder %s36, 8
      // Predicated region
      $region61: #{tpu_custom_call.1} parent=5 // pred_check
        %p557 = pneg %p556
      $region62: #{tpu_custom_call.1} parent=5 // pred_check_branch
        %559 = sbr.rel (%p557) target = $region64
      $region63: #{tpu_custom_call.1} parent=5 // pred_region
        // Predicated region
        $region65: #{tpu_custom_call.1} parent=63 // pred_check
          %p560 = pneg %p70
        $region66: #{tpu_custom_call.1} parent=63 // pred_check_branch
          %562 = sbr.rel (%p560) target = $region68
        $region67: #{tpu_custom_call.1} parent=63 // pred_region
          %s563 = sand.u32 %s60, 1
          %s564 = scalar_lea.sflag [#allocation4], %s563
          %s565 = sand.u32 %s60, 1
          %s566 = smul.addr %s565, 8
          %s567 = scalar_lea.vmem [#allocation3], %s566
          %s569 = ssub.s32 128, 128
          %570 = vsyncadd %s564, %s569
          %s571 = sadd.s32 %s43, %s44
          %s572 = smul.addr %s571, 128
          %s573 = scalar_lea.hbm %s0, %s572
          %s575 = sshll.u32 %s567, 4
          %s576 = int_to_ptr.vmem [resolvable:$true] %s575
          %578 = dma.hbm_to_vmem [thread:$0]  %s573, 128, %s576, %s564
        $region68: #{tpu_custom_call.1} parent=63 // pred_fallthru
          _
        // Predicated region
        $region69: #{tpu_custom_call.1} parent=63 // pred_check
          %p579 = pneg %p98
        $region70: #{tpu_custom_call.1} parent=63 // pred_check_branch
          %581 = sbr.rel (%p579) target = $region72
        $region71: #{tpu_custom_call.1} parent=63 // pred_region
          %s582 = sand.u32 %s36, 1
          %s583 = scalar_lea.sflag [#allocation7], %s582
          %s584 = sand.u32 %s88, 1
          %s585 = smul.addr %s584, 8
          %s586 = scalar_lea.vmem [#allocation6], %s585
          %s588 = ssub.s32 128, 128
          %589 = vsyncadd %s583, %s588
          %s590 = sadd.s32 %s43, %s44
          %s591 = smul.addr %s590, 128
          %s592 = scalar_lea.hbm %s1, %s591
          %s594 = sshll.u32 %s586, 4
          %s595 = int_to_ptr.vmem [resolvable:$true] %s594
          %597 = dma.hbm_to_vmem [thread:$0]  %s592, 128, %s595, %s583
        $region72: #{tpu_custom_call.1} parent=63 // pred_fallthru
          _
      $region64: #{tpu_custom_call.1} parent=5 // pred_fallthru
        _
      %p598 = scmp.le.s32.totalorder 1, %s36
      %p599 = scmp.lt.s32.totalorder %s36, 9
      %p600 = pnand %p598, %p599
      %p601 = pneg %p600
      // Predicated region
      $region73: #{tpu_custom_call.1} parent=5 // pred_check
        _
      $region74: #{tpu_custom_call.1} parent=5 // pred_check_branch
        %603 = sbr.rel (%p600) target = $region76
      $region75: #{tpu_custom_call.1} parent=5 // pred_region
        %s604 = ssub.s32 %s36, 1
        %s605 = sand.u32 %s63, 1
        %s606 = scalar_lea.sflag [#allocation4], %s605
        %s607 = sand.u32 %s63, 1
        %s608 = smul.addr %s607, 8
        %s609 = scalar_lea.vmem [#allocation3], %s608
        // Predicated region
        $region77: #{tpu_custom_call.1} parent=75 // pred_check
          %p610 = pneg %p76
        $region78: #{tpu_custom_call.1} parent=75 // pred_check_branch
          %612 = sbr.rel (%p610) target = $region80
        $region79: #{tpu_custom_call.1} parent=75 // pred_region
          %613 = dma.done %s606, 128
        $region80: #{tpu_custom_call.1} parent=75 // pred_fallthru
          _
        %s614 = sand.u32 %s41, 1
        %s615 = scalar_lea.sflag [#allocation7], %s614
        %s616 = sand.u32 %s91, 1
        %s617 = smul.addr %s616, 8
        %s618 = scalar_lea.vmem [#allocation6], %s617
        // Predicated region
        $region81: #{tpu_custom_call.1} parent=75 // pred_check
          %p619 = pneg %p104
        $region82: #{tpu_custom_call.1} parent=75 // pred_check_branch
          %621 = sbr.rel (%p619) target = $region84
        $region83: #{tpu_custom_call.1} parent=75 // pred_region
          %622 = dma.done %s615, 128
        $region84: #{tpu_custom_call.1} parent=75 // pred_fallthru
          _
        // Predicated region
        $region85: #{tpu_custom_call.1} parent=75 // pred_check
          %p623 = pneg %p130
        $region86: #{tpu_custom_call.1} parent=75 // pred_check_branch
          %625 = sbr.rel (%p623) target = $region88
        $region87: #{tpu_custom_call.1} parent=75 // pred_region
          %626 = dma.done [#allocation7], 128
        $region88: #{tpu_custom_call.1} parent=75 // pred_fallthru
          _
        // Predicated region
        $region89: #{tpu_custom_call.1} parent=75 // pred_check
          %p627 = pneg %p151
        $region90: #{tpu_custom_call.1} parent=75 // pred_check_branch
          %629 = sbr.rel (%p627) target = $region92
        $region91: #{tpu_custom_call.1} parent=75 // pred_region
          %630 = dma.done [#allocation10], 2048
        $region92: #{tpu_custom_call.1} parent=75 // pred_fallthru
          _
        // Predicated region
        $region93: #{tpu_custom_call.1} parent=75 // pred_check
          %p631 = pneg %p172
        $region94: #{tpu_custom_call.1} parent=75 // pred_check_branch
          %633 = sbr.rel (%p631) target = $region96
        $region95: #{tpu_custom_call.1} parent=75 // pred_region
          %634 = dma.done [#allocation10], 2048
        $region96: #{tpu_custom_call.1} parent=75 // pred_fallthru
          _
        // Predicated region
        $region97: #{tpu_custom_call.1} parent=75 // pred_check
          %p635 = pneg %p193
        $region98: #{tpu_custom_call.1} parent=75 // pred_check_branch
          %637 = sbr.rel (%p635) target = $region100
        $region99: #{tpu_custom_call.1} parent=75 // pred_region
          %638 = dma.done [#allocation13], 2048
        $region100: #{tpu_custom_call.1} parent=75 // pred_fallthru
          _
        // Predicated region
        $region101: #{tpu_custom_call.1} parent=75 // pred_check
          %p639 = pneg %p235
        $region102: #{tpu_custom_call.1} parent=75 // pred_check_branch
          %641 = sbr.rel (%p639) target = $region104
        $region103: #{tpu_custom_call.1} parent=75 // pred_region
          %642 = dma.done [#allocation13], 2048
        $region104: #{tpu_custom_call.1} parent=75 // pred_fallthru
          _
        // Predicated region
        $region105: #{tpu_custom_call.1} parent=75 // pred_check
          %p643 = pneg %p256
        $region106: #{tpu_custom_call.1} parent=75 // pred_check_branch
          %645 = sbr.rel (%p643) target = $region108
        $region107: #{tpu_custom_call.1} parent=75 // pred_region
          %646 = dma.done [#allocation16], 2048
        $region108: #{tpu_custom_call.1} parent=75 // pred_fallthru
          _
        // Predicated region
        $region109: #{tpu_custom_call.1} parent=75 // pred_check
          %p647 = pneg %p277
        $region110: #{tpu_custom_call.1} parent=75 // pred_check_branch
          %649 = sbr.rel (%p647) target = $region112
        $region111: #{tpu_custom_call.1} parent=75 // pred_region
          %650 = dma.done [#allocation16], 2048
        $region112: #{tpu_custom_call.1} parent=75 // pred_fallthru
          _
        // Predicated region
        $region113: #{tpu_custom_call.1} parent=75 // pred_check
          %p651 = pneg %p319
        $region114: #{tpu_custom_call.1} parent=75 // pred_check_branch
          %653 = sbr.rel (%p651) target = $region116
        $region115: #{tpu_custom_call.1} parent=75 // pred_region
          %654 = dma.done [#allocation19], 2048
        $region116: #{tpu_custom_call.1} parent=75 // pred_fallthru
          _
        // Predicated region
        $region117: #{tpu_custom_call.1} parent=75 // pred_check
          %p655 = pneg %p340
        $region118: #{tpu_custom_call.1} parent=75 // pred_check_branch
          %657 = sbr.rel (%p655) target = $region120
        $region119: #{tpu_custom_call.1} parent=75 // pred_region
          %658 = dma.done [#allocation19], 2048
        $region120: #{tpu_custom_call.1} parent=75 // pred_fallthru
          _
        %s659 = sand.u32 %s63, 1
        %s660 = scalar_lea.sflag [#allocation4], %s659
        %s661 = sand.u32 %s63, 1
        %s662 = smul.addr %s661, 8
        %s663 = scalar_lea.vmem [#allocation3], %s662
        %p664 = pneg %p76
        %p665 = pneg %p73
        %s666 = sand.u32 %s41, 1
        %s667 = scalar_lea.sflag [#allocation7], %s666
        %s668 = sand.u32 %s91, 1
        %s669 = smul.addr %s668, 8
        %s670 = scalar_lea.vmem [#allocation6], %s669
        %p671 = pneg %p104
        %p672 = pneg %p101
        %p673 = pneg %p130
        %p674 = pneg %p127
        %p675 = pneg %p151
        %p676 = pneg %p148
        %p677 = pneg %p172
        %p678 = pneg %p169
        %p679 = pneg %p193
        %p680 = pneg %p190
        %p681 = pneg %p214
        %p682 = pneg %p211
        %p683 = pneg %p235
        %p684 = pneg %p232
        %p685 = pneg %p256
        %p686 = pneg %p253
        %p687 = pneg %p277
        %p688 = pneg %p274
        %p689 = pneg %p298
        %p690 = pneg %p295
        %p691 = pneg %p319
        %p692 = pneg %p316
        %p693 = pneg %p340
        %p694 = pneg %p337
        %p695 = pneg %p361
        %p696 = pneg %p358
        %p697 = pneg %p389
        %p698 = pneg %p386
        %s699 = sand.u32 %s376, 1
        %s700 = scalar_lea.sflag [#allocation5], %s699
        %s701 = sand.u32 %s376, 1
        %s702 = smul.addr %s701, 8
        %s703 = scalar_lea.vmem [#allocation21], %s702
        %p704 = pneg %p415
        %p705 = pneg %p412
        %p706 = scmp.eq.s32.totalorder %s46, 0
        // Predicated region
        $region121: #{tpu_custom_call.1} parent=75 // pred_check
          %p707 = pneg %p706
        $region122: #{tpu_custom_call.1} parent=75 // pred_check_branch
          %709 = sbr.rel (%p707) target = $region124
        $region123: #{tpu_custom_call.1} parent=75 // pred_region
          %v710 = vld [vmem:[#allocation8] sm:$0xff]
          %711 = vst [vmem:[#allocation2] sm:$0xff] %v710
        $region124: #{tpu_custom_call.1} parent=75 // pred_fallthru
          _
        %v712 = vld [vmem:[#allocation2] sm:$0xff]
        %v713 = vld [vmem:[%s609] sm:$0xff]
        %v714 = vld [vmem:[%s618] sm:$0xff]
        %v715 = vld [vmem:[#allocation9] sm:$0xff]
        %v716 = vld [vmem:[#allocation9 + $0x8] sm:$0xff]
        %v717 = vld [vmem:[#allocation9 + $0x10] sm:$0xff]
        %v718 = vld [vmem:[#allocation9 + $0x18] sm:$0xff]
        %v719 = vld [vmem:[#allocation9 + $0x20] sm:$0xff]
        %v720 = vld [vmem:[#allocation9 + $0x28] sm:$0xff]
        %v721 = vld [vmem:[#allocation9 + $0x30] sm:$0xff]
        %v722 = vld [vmem:[#allocation9 + $0x38] sm:$0xff]
        %v723 = vld [vmem:[#allocation9 + $0x40] sm:$0xff]
        %v724 = vld [vmem:[#allocation9 + $0x48] sm:$0xff]
        %v725 = vld [vmem:[#allocation9 + $0x50] sm:$0xff]
        %v726 = vld [vmem:[#allocation9 + $0x58] sm:$0xff]
        %v727 = vld [vmem:[#allocation9 + $0x60] sm:$0xff]
        %v728 = vld [vmem:[#allocation9 + $0x68] sm:$0xff]
        %v729 = vld [vmem:[#allocation9 + $0x70] sm:$0xff]
        %v730 = vld [vmem:[#allocation9 + $0x78] sm:$0xff]
        %v731 = vld [vmem:[#allocation11] sm:$0xff]
        %v732 = vld [vmem:[#allocation11 + $0x8] sm:$0xff]
        %v733 = vld [vmem:[#allocation11 + $0x10] sm:$0xff]
        %v734 = vld [vmem:[#allocation11 + $0x18] sm:$0xff]
        %v735 = vld [vmem:[#allocation11 + $0x20] sm:$0xff]
        %v736 = vld [vmem:[#allocation11 + $0x28] sm:$0xff]
        %v737 = vld [vmem:[#allocation11 + $0x30] sm:$0xff]
        %v738 = vld [vmem:[#allocation11 + $0x38] sm:$0xff]
        %v739 = vld [vmem:[#allocation11 + $0x40] sm:$0xff]
        %v740 = vld [vmem:[#allocation11 + $0x48] sm:$0xff]
        %v741 = vld [vmem:[#allocation11 + $0x50] sm:$0xff]
        %v742 = vld [vmem:[#allocation11 + $0x58] sm:$0xff]
        %v743 = vld [vmem:[#allocation11 + $0x60] sm:$0xff]
        %v744 = vld [vmem:[#allocation11 + $0x68] sm:$0xff]
        %v745 = vld [vmem:[#allocation11 + $0x70] sm:$0xff]
        %v746 = vld [vmem:[#allocation11 + $0x78] sm:$0xff]
        %747 = vmatprep.subr.mxu0 0.0
        %748 = vmatpush1.msra.mxu0 %v746
        %749 = vmatprep.subr.mxu0 0.0
        %750 = vmatpush1.msra.mxu0 %v745
        %751 = vmatprep.subr.mxu0 0.0
        %752 = vmatpush1.msra.mxu0 %v744
        %753 = vmatprep.subr.mxu0 0.0
        %754 = vmatpush1.msra.mxu0 %v743
        %755 = vmatprep.subr.mxu0 0.0
        %756 = vmatpush1.msra.mxu0 %v742
        %757 = vmatprep.subr.mxu0 0.0
        %758 = vmatpush1.msra.mxu0 %v741
        %759 = vmatprep.subr.mxu0 0.0
        %760 = vmatpush1.msra.mxu0 %v740
        %761 = vmatprep.subr.mxu0 0.0
        %762 = vmatpush1.msra.mxu0 %v739
        %763 = vmatprep.subr.mxu0 0.0
        %764 = vmatpush1.msra.mxu0 %v738
        %765 = vmatprep.subr.mxu0 0.0
        %766 = vmatpush1.msra.mxu0 %v737
        %767 = vmatprep.subr.mxu0 0.0
        %768 = vmatpush1.msra.mxu0 %v736
        %769 = vmatprep.subr.mxu0 0.0
        %770 = vmatpush1.msra.mxu0 %v735
        %771 = vmatprep.subr.mxu0 0.0
        %772 = vmatpush1.msra.mxu0 %v734
        %773 = vmatprep.subr.mxu0 0.0
        %774 = vmatpush1.msra.mxu0 %v733
        %775 = vmatprep.subr.mxu0 0.0
        %776 = vmatpush1.msra.mxu0 %v732
        %777 = vmatprep.subr.mxu0 0.0
        %778 = vmatpush1.msra.mxu0 %v731
        %779 = vmatprep.subr.mxu0 0.0
        %780 = vmatpush2.msra.mxu0 0.0
        %781 = vmatprep.subr.mxu0 0.0
        %782 = vmatpush2.msra.mxu0 0.0
        %783 = vmatprep.subr.mxu0 0.0
        %784 = vmatpush2.msra.mxu0 0.0
        %785 = vmatprep.subr.mxu0 0.0
        %786 = vmatpush2.msra.mxu0 0.0
        %787 = vmatprep.subr.mxu0 0.0
        %788 = vmatpush2.msra.mxu0 0.0
        %789 = vmatprep.subr.mxu0 0.0
        %790 = vmatpush2.msra.mxu0 0.0
        %791 = vmatprep.subr.mxu0 0.0
        %792 = vmatpush2.msra.mxu0 0.0
        %793 = vmatprep.subr.mxu0 0.0
        %794 = vmatpush2.msra.mxu0 0.0
        %795 = vmatprep.subr.mxu0 0.0
        %796 = vmatpush2.msra.mxu0 0.0
        %797 = vmatprep.subr.mxu0 0.0
        %798 = vmatpush2.msra.mxu0 0.0
        %799 = vmatprep.subr.mxu0 0.0
        %800 = vmatpush2.msra.mxu0 0.0
        %801 = vmatprep.subr.mxu0 0.0
        %802 = vmatpush2.msra.mxu0 0.0
        %803 = vmatprep.subr.mxu0 0.0
        %804 = vmatpush2.msra.mxu0 0.0
        %805 = vmatprep.subr.mxu0 0.0
        %806 = vmatpush2.msra.mxu0 0.0
        %807 = vmatprep.subr.mxu0 0.0
        %808 = vmatpush2.msra.mxu0 0.0
        %809 = vmatprep.subr.mxu0 0.0
        %810 = vmatpush2.msra.mxu0 0.0
        %811 = vmatprep.mubr.f32.mxu0 0.0
        %812 = vmatmul.mubr.f32.gmra.mxu0 %v714
        %v813 = vpop.f32.mrf.mxu0
        %v814 = vadd.f32 0.0, %v813
        %v815 = vpop.f32.mrf.mxu0
        %816 = vdwg.mxu0
        %817 = vmatprep.subr.mxu0 0.0
        %818 = vmatpush1.msra.mxu0 %v730
        %819 = vmatprep.subr.mxu0 0.0
        %820 = vmatpush1.msra.mxu0 %v729
        %821 = vmatprep.subr.mxu0 0.0
        %822 = vmatpush1.msra.mxu0 %v728
        %823 = vmatprep.subr.mxu0 0.0
        %824 = vmatpush1.msra.mxu0 %v727
        %825 = vmatprep.subr.mxu0 0.0
        %826 = vmatpush1.msra.mxu0 %v726
        %827 = vmatprep.subr.mxu0 0.0
        %828 = vmatpush1.msra.mxu0 %v725
        %829 = vmatprep.subr.mxu0 0.0
        %830 = vmatpush1.msra.mxu0 %v724
        %831 = vmatprep.subr.mxu0 0.0
        %832 = vmatpush1.msra.mxu0 %v723
        %833 = vmatprep.subr.mxu0 0.0
        %834 = vmatpush1.msra.mxu0 %v722
        %835 = vmatprep.subr.mxu0 0.0
        %836 = vmatpush1.msra.mxu0 %v721
        %837 = vmatprep.subr.mxu0 0.0
        %838 = vmatpush1.msra.mxu0 %v720
        %839 = vmatprep.subr.mxu0 0.0
        %840 = vmatpush1.msra.mxu0 %v719
        %841 = vmatprep.subr.mxu0 0.0
        %842 = vmatpush1.msra.mxu0 %v718
        %843 = vmatprep.subr.mxu0 0.0
        %844 = vmatpush1.msra.mxu0 %v717
        %845 = vmatprep.subr.mxu0 0.0
        %846 = vmatpush1.msra.mxu0 %v716
        %847 = vmatprep.subr.mxu0 0.0
        %848 = vmatpush1.msra.mxu0 %v715
        %849 = vmatprep.subr.mxu0 0.0
        %850 = vmatpush2.msra.mxu0 0.0
        %851 = vmatprep.subr.mxu0 0.0
        %852 = vmatpush2.msra.mxu0 0.0
        %853 = vmatprep.subr.mxu0 0.0
        %854 = vmatpush2.msra.mxu0 0.0
        %855 = vmatprep.subr.mxu0 0.0
        %856 = vmatpush2.msra.mxu0 0.0
        %857 = vmatprep.subr.mxu0 0.0
        %858 = vmatpush2.msra.mxu0 0.0
        %859 = vmatprep.subr.mxu0 0.0
        %860 = vmatpush2.msra.mxu0 0.0
        %861 = vmatprep.subr.mxu0 0.0
        %862 = vmatpush2.msra.mxu0 0.0
        %863 = vmatprep.subr.mxu0 0.0
        %864 = vmatpush2.msra.mxu0 0.0
        %865 = vmatprep.subr.mxu0 0.0
        %866 = vmatpush2.msra.mxu0 0.0
        %867 = vmatprep.subr.mxu0 0.0
        %868 = vmatpush2.msra.mxu0 0.0
        %869 = vmatprep.subr.mxu0 0.0
        %870 = vmatpush2.msra.mxu0 0.0
        %871 = vmatprep.subr.mxu0 0.0
        %872 = vmatpush2.msra.mxu0 0.0
        %873 = vmatprep.subr.mxu0 0.0
        %874 = vmatpush2.msra.mxu0 0.0
        %875 = vmatprep.subr.mxu0 0.0
        %876 = vmatpush2.msra.mxu0 0.0
        %877 = vmatprep.subr.mxu0 0.0
        %878 = vmatpush2.msra.mxu0 0.0
        %879 = vmatprep.subr.mxu0 0.0
        %880 = vmatpush2.msra.mxu0 0.0
        %881 = vmatprep.mubr.f32.mxu0 0.0
        %882 = vmatmul.mubr.f32.gmra.mxu0 %v713
        %v883 = vpop.f32.mrf.mxu0
        %v884 = vadd.f32 %v814, %v883
        %v885 = vpop.f32.mrf.mxu0
        %886 = vdwg.mxu0
        %v887 = vld [vmem:[#allocation12] sm:$0xff]
        %v888 = vld [vmem:[#allocation12 + $0x8] sm:$0xff]
        %v889 = vld [vmem:[#allocation12 + $0x10] sm:$0xff]
        %v890 = vld [vmem:[#allocation12 + $0x18] sm:$0xff]
        %v891 = vld [vmem:[#allocation12 + $0x20] sm:$0xff]
        %v892 = vld [vmem:[#allocation12 + $0x28] sm:$0xff]
        %v893 = vld [vmem:[#allocation12 + $0x30] sm:$0xff]
        %v894 = vld [vmem:[#allocation12 + $0x38] sm:$0xff]
        %v895 = vld [vmem:[#allocation12 + $0x40] sm:$0xff]
        %v896 = vld [vmem:[#allocation12 + $0x48] sm:$0xff]
        %v897 = vld [vmem:[#allocation12 + $0x50] sm:$0xff]
        %v898 = vld [vmem:[#allocation12 + $0x58] sm:$0xff]
        %v899 = vld [vmem:[#allocation12 + $0x60] sm:$0xff]
        %v900 = vld [vmem:[#allocation12 + $0x68] sm:$0xff]
        %v901 = vld [vmem:[#allocation12 + $0x70] sm:$0xff]
        %v902 = vld [vmem:[#allocation12 + $0x78] sm:$0xff]
        %903 = vmatprep.subr.mxu0 0.0
        %904 = vmatpush1.msra.mxu0 %v902
        %905 = vmatprep.subr.mxu0 0.0
        %906 = vmatpush1.msra.mxu0 %v901
        %907 = vmatprep.subr.mxu0 0.0
        %908 = vmatpush1.msra.mxu0 %v900
        %909 = vmatprep.subr.mxu0 0.0
        %910 = vmatpush1.msra.mxu0 %v899
        %911 = vmatprep.subr.mxu0 0.0
        %912 = vmatpush1.msra.mxu0 %v898
        %913 = vmatprep.subr.mxu0 0.0
        %914 = vmatpush1.msra.mxu0 %v897
        %915 = vmatprep.subr.mxu0 0.0
        %916 = vmatpush1.msra.mxu0 %v896
        %917 = vmatprep.subr.mxu0 0.0
        %918 = vmatpush1.msra.mxu0 %v895
        %919 = vmatprep.subr.mxu0 0.0
        %920 = vmatpush1.msra.mxu0 %v894
        %921 = vmatprep.subr.mxu0 0.0
        %922 = vmatpush1.msra.mxu0 %v893
        %923 = vmatprep.subr.mxu0 0.0
        %924 = vmatpush1.msra.mxu0 %v892
        %925 = vmatprep.subr.mxu0 0.0
        %926 = vmatpush1.msra.mxu0 %v891
        %927 = vmatprep.subr.mxu0 0.0
        %928 = vmatpush1.msra.mxu0 %v890
        %929 = vmatprep.subr.mxu0 0.0
        %930 = vmatpush1.msra.mxu0 %v889
        %931 = vmatprep.subr.mxu0 0.0
        %932 = vmatpush1.msra.mxu0 %v888
        %933 = vmatprep.subr.mxu0 0.0
        %934 = vmatpush1.msra.mxu0 %v887
        %935 = vmatprep.subr.mxu0 0.0
        %936 = vmatpush2.msra.mxu0 0.0
        %937 = vmatprep.subr.mxu0 0.0
        %938 = vmatpush2.msra.mxu0 0.0
        %939 = vmatprep.subr.mxu0 0.0
        %940 = vmatpush2.msra.mxu0 0.0
        %941 = vmatprep.subr.mxu0 0.0
        %942 = vmatpush2.msra.mxu0 0.0
        %943 = vmatprep.subr.mxu0 0.0
        %944 = vmatpush2.msra.mxu0 0.0
        %945 = vmatprep.subr.mxu0 0.0
        %946 = vmatpush2.msra.mxu0 0.0
        %947 = vmatprep.subr.mxu0 0.0
        %948 = vmatpush2.msra.mxu0 0.0
        %949 = vmatprep.subr.mxu0 0.0
        %950 = vmatpush2.msra.mxu0 0.0
        %951 = vmatprep.subr.mxu0 0.0
        %952 = vmatpush2.msra.mxu0 0.0
        %953 = vmatprep.subr.mxu0 0.0
        %954 = vmatpush2.msra.mxu0 0.0
        %955 = vmatprep.subr.mxu0 0.0
        %956 = vmatpush2.msra.mxu0 0.0
        %957 = vmatprep.subr.mxu0 0.0
        %958 = vmatpush2.msra.mxu0 0.0
        %959 = vmatprep.subr.mxu0 0.0
        %960 = vmatpush2.msra.mxu0 0.0
        %961 = vmatprep.subr.mxu0 0.0
        %962 = vmatpush2.msra.mxu0 0.0
        %963 = vmatprep.subr.mxu0 0.0
        %964 = vmatpush2.msra.mxu0 0.0
        %965 = vmatprep.subr.mxu0 0.0
        %966 = vmatpush2.msra.mxu0 0.0
        %967 = vmatprep.mubr.f32.mxu0 0.0
        %968 = vmatmul.mubr.f32.gmra.mxu0 %v712
        %v969 = vpop.f32.mrf.mxu0
        %v970 = vadd.f32 0.0, %v969
        %v971 = vpop.f32.mrf.mxu0
        %972 = vdwg.mxu0
        %v973 = vadd.f32 %v884, %v970
        %v974 = vld [vmem:[%s6] sm:$0x1]
        %v976 = vlaneseq
        %v977 = vshrl.u32 %v976, 7
        %v978 = vsub.s32 0, %v977
        %v979 = vrot.slane %v974, %v978
        %v981 = vadd.f32 %v973, %v979
        %v982 = vld [vmem:[#allocation14] sm:$0xff]
        %v983 = vld [vmem:[#allocation14 + $0x8] sm:$0xff]
        %v984 = vld [vmem:[#allocation14 + $0x10] sm:$0xff]
        %v985 = vld [vmem:[#allocation14 + $0x18] sm:$0xff]
        %v986 = vld [vmem:[#allocation14 + $0x20] sm:$0xff]
        %v987 = vld [vmem:[#allocation14 + $0x28] sm:$0xff]
        %v988 = vld [vmem:[#allocation14 + $0x30] sm:$0xff]
        %v989 = vld [vmem:[#allocation14 + $0x38] sm:$0xff]
        %v990 = vld [vmem:[#allocation14 + $0x40] sm:$0xff]
        %v991 = vld [vmem:[#allocation14 + $0x48] sm:$0xff]
        %v992 = vld [vmem:[#allocation14 + $0x50] sm:$0xff]
        %v993 = vld [vmem:[#allocation14 + $0x58] sm:$0xff]
        %v994 = vld [vmem:[#allocation14 + $0x60] sm:$0xff]
        %v995 = vld [vmem:[#allocation14 + $0x68] sm:$0xff]
        %v996 = vld [vmem:[#allocation14 + $0x70] sm:$0xff]
        %v997 = vld [vmem:[#allocation14 + $0x78] sm:$0xff]
        %v998 = vld [vmem:[#allocation15] sm:$0xff]
        %v999 = vld [vmem:[#allocation15 + $0x8] sm:$0xff]
        %v1000 = vld [vmem:[#allocation15 + $0x10] sm:$0xff]
        %v1001 = vld [vmem:[#allocation15 + $0x18] sm:$0xff]
        %v1002 = vld [vmem:[#allocation15 + $0x20] sm:$0xff]
        %v1003 = vld [vmem:[#allocation15 + $0x28] sm:$0xff]
        %v1004 = vld [vmem:[#allocation15 + $0x30] sm:$0xff]
        %v1005 = vld [vmem:[#allocation15 + $0x38] sm:$0xff]
        %v1006 = vld [vmem:[#allocation15 + $0x40] sm:$0xff]
        %v1007 = vld [vmem:[#allocation15 + $0x48] sm:$0xff]
        %v1008 = vld [vmem:[#allocation15 + $0x50] sm:$0xff]
        %v1009 = vld [vmem:[#allocation15 + $0x58] sm:$0xff]
        %v1010 = vld [vmem:[#allocation15 + $0x60] sm:$0xff]
        %v1011 = vld [vmem:[#allocation15 + $0x68] sm:$0xff]
        %v1012 = vld [vmem:[#allocation15 + $0x70] sm:$0xff]
        %v1013 = vld [vmem:[#allocation15 + $0x78] sm:$0xff]
        %1014 = vmatprep.subr.mxu0 0.0
        %1015 = vmatpush1.msra.mxu0 %v1013
        %1016 = vmatprep.subr.mxu0 0.0
        %1017 = vmatpush1.msra.mxu0 %v1012
        %1018 = vmatprep.subr.mxu0 0.0
        %1019 = vmatpush1.msra.mxu0 %v1011
        %1020 = vmatprep.subr.mxu0 0.0
        %1021 = vmatpush1.msra.mxu0 %v1010
        %1022 = vmatprep.subr.mxu0 0.0
        %1023 = vmatpush1.msra.mxu0 %v1009
        %1024 = vmatprep.subr.mxu0 0.0
        %1025 = vmatpush1.msra.mxu0 %v1008
        %1026 = vmatprep.subr.mxu0 0.0
        %1027 = vmatpush1.msra.mxu0 %v1007
        %1028 = vmatprep.subr.mxu0 0.0
        %1029 = vmatpush1.msra.mxu0 %v1006
        %1030 = vmatprep.subr.mxu0 0.0
        %1031 = vmatpush1.msra.mxu0 %v1005
        %1032 = vmatprep.subr.mxu0 0.0
        %1033 = vmatpush1.msra.mxu0 %v1004
        %1034 = vmatprep.subr.mxu0 0.0
        %1035 = vmatpush1.msra.mxu0 %v1003
        %1036 = vmatprep.subr.mxu0 0.0
        %1037 = vmatpush1.msra.mxu0 %v1002
        %1038 = vmatprep.subr.mxu0 0.0
        %1039 = vmatpush1.msra.mxu0 %v1001
        %1040 = vmatprep.subr.mxu0 0.0
        %1041 = vmatpush1.msra.mxu0 %v1000
        %1042 = vmatprep.subr.mxu0 0.0
        %1043 = vmatpush1.msra.mxu0 %v999
        %1044 = vmatprep.subr.mxu0 0.0
        %1045 = vmatpush1.msra.mxu0 %v998
        %1046 = vmatprep.subr.mxu0 0.0
        %1047 = vmatpush2.msra.mxu0 0.0
        %1048 = vmatprep.subr.mxu0 0.0
        %1049 = vmatpush2.msra.mxu0 0.0
        %1050 = vmatprep.subr.mxu0 0.0
        %1051 = vmatpush2.msra.mxu0 0.0
        %1052 = vmatprep.subr.mxu0 0.0
        %1053 = vmatpush2.msra.mxu0 0.0
        %1054 = vmatprep.subr.mxu0 0.0
        %1055 = vmatpush2.msra.mxu0 0.0
        %1056 = vmatprep.subr.mxu0 0.0
        %1057 = vmatpush2.msra.mxu0 0.0
        %1058 = vmatprep.subr.mxu0 0.0
        %1059 = vmatpush2.msra.mxu0 0.0
        %1060 = vmatprep.subr.mxu0 0.0
        %1061 = vmatpush2.msra.mxu0 0.0
        %1062 = vmatprep.subr.mxu0 0.0
        %1063 = vmatpush2.msra.mxu0 0.0
        %1064 = vmatprep.subr.mxu0 0.0
        %1065 = vmatpush2.msra.mxu0 0.0
        %1066 = vmatprep.subr.mxu0 0.0
        %1067 = vmatpush2.msra.mxu0 0.0
        %1068 = vmatprep.subr.mxu0 0.0
        %1069 = vmatpush2.msra.mxu0 0.0
        %1070 = vmatprep.subr.mxu0 0.0
        %1071 = vmatpush2.msra.mxu0 0.0
        %1072 = vmatprep.subr.mxu0 0.0
        %1073 = vmatpush2.msra.mxu0 0.0
        %1074 = vmatprep.subr.mxu0 0.0
        %1075 = vmatpush2.msra.mxu0 0.0
        %1076 = vmatprep.subr.mxu0 0.0
        %1077 = vmatpush2.msra.mxu0 0.0
        %1078 = vmatprep.mubr.f32.mxu0 0.0
        %1079 = vmatmul.mubr.f32.gmra.mxu0 %v714
        %v1080 = vpop.f32.mrf.mxu0
        %v1081 = vadd.f32 0.0, %v1080
        %v1082 = vpop.f32.mrf.mxu0
        %1083 = vdwg.mxu0
        %1084 = vmatprep.subr.mxu0 0.0
        %1085 = vmatpush1.msra.mxu0 %v997
        %1086 = vmatprep.subr.mxu0 0.0
        %1087 = vmatpush1.msra.mxu0 %v996
        %1088 = vmatprep.subr.mxu0 0.0
        %1089 = vmatpush1.msra.mxu0 %v995
        %1090 = vmatprep.subr.mxu0 0.0
        %1091 = vmatpush1.msra.mxu0 %v994
        %1092 = vmatprep.subr.mxu0 0.0
        %1093 = vmatpush1.msra.mxu0 %v993
        %1094 = vmatprep.subr.mxu0 0.0
        %1095 = vmatpush1.msra.mxu0 %v992
        %1096 = vmatprep.subr.mxu0 0.0
        %1097 = vmatpush1.msra.mxu0 %v991
        %1098 = vmatprep.subr.mxu0 0.0
        %1099 = vmatpush1.msra.mxu0 %v990
        %1100 = vmatprep.subr.mxu0 0.0
        %1101 = vmatpush1.msra.mxu0 %v989
        %1102 = vmatprep.subr.mxu0 0.0
        %1103 = vmatpush1.msra.mxu0 %v988
        %1104 = vmatprep.subr.mxu0 0.0
        %1105 = vmatpush1.msra.mxu0 %v987
        %1106 = vmatprep.subr.mxu0 0.0
        %1107 = vmatpush1.msra.mxu0 %v986
        %1108 = vmatprep.subr.mxu0 0.0
        %1109 = vmatpush1.msra.mxu0 %v985
        %1110 = vmatprep.subr.mxu0 0.0
        %1111 = vmatpush1.msra.mxu0 %v984
        %1112 = vmatprep.subr.mxu0 0.0
        %1113 = vmatpush1.msra.mxu0 %v983
        %1114 = vmatprep.subr.mxu0 0.0
        %1115 = vmatpush1.msra.mxu0 %v982
        %1116 = vmatprep.subr.mxu0 0.0
        %1117 = vmatpush2.msra.mxu0 0.0
        %1118 = vmatprep.subr.mxu0 0.0
        %1119 = vmatpush2.msra.mxu0 0.0
        %1120 = vmatprep.subr.mxu0 0.0
        %1121 = vmatpush2.msra.mxu0 0.0
        %1122 = vmatprep.subr.mxu0 0.0
        %1123 = vmatpush2.msra.mxu0 0.0
        %1124 = vmatprep.subr.mxu0 0.0
        %1125 = vmatpush2.msra.mxu0 0.0
        %1126 = vmatprep.subr.mxu0 0.0
        %1127 = vmatpush2.msra.mxu0 0.0
        %1128 = vmatprep.subr.mxu0 0.0
        %1129 = vmatpush2.msra.mxu0 0.0
        %1130 = vmatprep.subr.mxu0 0.0
        %1131 = vmatpush2.msra.mxu0 0.0
        %1132 = vmatprep.subr.mxu0 0.0
        %1133 = vmatpush2.msra.mxu0 0.0
        %1134 = vmatprep.subr.mxu0 0.0
        %1135 = vmatpush2.msra.mxu0 0.0
        %1136 = vmatprep.subr.mxu0 0.0
        %1137 = vmatpush2.msra.mxu0 0.0
        %1138 = vmatprep.subr.mxu0 0.0
        %1139 = vmatpush2.msra.mxu0 0.0
        %1140 = vmatprep.subr.mxu0 0.0
        %1141 = vmatpush2.msra.mxu0 0.0
        %1142 = vmatprep.subr.mxu0 0.0
        %1143 = vmatpush2.msra.mxu0 0.0
        %1144 = vmatprep.subr.mxu0 0.0
        %1145 = vmatpush2.msra.mxu0 0.0
        %1146 = vmatprep.subr.mxu0 0.0
        %1147 = vmatpush2.msra.mxu0 0.0
        %1148 = vmatprep.mubr.f32.mxu0 0.0
        %1149 = vmatmul.mubr.f32.gmra.mxu0 %v713
        %v1150 = vpop.f32.mrf.mxu0
        %v1151 = vadd.f32 %v1081, %v1150
        %v1152 = vpop.f32.mrf.mxu0
        %1153 = vdwg.mxu0
        %v1154 = vld [vmem:[#allocation17] sm:$0xff]
        %v1155 = vld [vmem:[#allocation17 + $0x8] sm:$0xff]
        %v1156 = vld [vmem:[#allocation17 + $0x10] sm:$0xff]
        %v1157 = vld [vmem:[#allocation17 + $0x18] sm:$0xff]
        %v1158 = vld [vmem:[#allocation17 + $0x20] sm:$0xff]
        %v1159 = vld [vmem:[#allocation17 + $0x28] sm:$0xff]
        %v1160 = vld [vmem:[#allocation17 + $0x30] sm:$0xff]
        %v1161 = vld [vmem:[#allocation17 + $0x38] sm:$0xff]
        %v1162 = vld [vmem:[#allocation17 + $0x40] sm:$0xff]
        %v1163 = vld [vmem:[#allocation17 + $0x48] sm:$0xff]
        %v1164 = vld [vmem:[#allocation17 + $0x50] sm:$0xff]
        %v1165 = vld [vmem:[#allocation17 + $0x58] sm:$0xff]
        %v1166 = vld [vmem:[#allocation17 + $0x60] sm:$0xff]
        %v1167 = vld [vmem:[#allocation17 + $0x68] sm:$0xff]
        %v1168 = vld [vmem:[#allocation17 + $0x70] sm:$0xff]
        %v1169 = vld [vmem:[#allocation17 + $0x78] sm:$0xff]
        %1170 = vmatprep.subr.mxu0 0.0
        %1171 = vmatpush1.msra.mxu0 %v1169
        %1172 = vmatprep.subr.mxu0 0.0
        %1173 = vmatpush1.msra.mxu0 %v1168
        %1174 = vmatprep.subr.mxu0 0.0
        %1175 = vmatpush1.msra.mxu0 %v1167
        %1176 = vmatprep.subr.mxu0 0.0
        %1177 = vmatpush1.msra.mxu0 %v1166
        %1178 = vmatprep.subr.mxu0 0.0
        %1179 = vmatpush1.msra.mxu0 %v1165
        %1180 = vmatprep.subr.mxu0 0.0
        %1181 = vmatpush1.msra.mxu0 %v1164
        %1182 = vmatprep.subr.mxu0 0.0
        %1183 = vmatpush1.msra.mxu0 %v1163
        %1184 = vmatprep.subr.mxu0 0.0
        %1185 = vmatpush1.msra.mxu0 %v1162
        %1186 = vmatprep.subr.mxu0 0.0
        %1187 = vmatpush1.msra.mxu0 %v1161
        %1188 = vmatprep.subr.mxu0 0.0
        %1189 = vmatpush1.msra.mxu0 %v1160
        %1190 = vmatprep.subr.mxu0 0.0
        %1191 = vmatpush1.msra.mxu0 %v1159
        %1192 = vmatprep.subr.mxu0 0.0
        %1193 = vmatpush1.msra.mxu0 %v1158
        %1194 = vmatprep.subr.mxu0 0.0
        %1195 = vmatpush1.msra.mxu0 %v1157
        %1196 = vmatprep.subr.mxu0 0.0
        %1197 = vmatpush1.msra.mxu0 %v1156
        %1198 = vmatprep.subr.mxu0 0.0
        %1199 = vmatpush1.msra.mxu0 %v1155
        %1200 = vmatprep.subr.mxu0 0.0
        %1201 = vmatpush1.msra.mxu0 %v1154
        %1202 = vmatprep.subr.mxu0 0.0
        %1203 = vmatpush2.msra.mxu0 0.0
        %1204 = vmatprep.subr.mxu0 0.0
        %1205 = vmatpush2.msra.mxu0 0.0
        %1206 = vmatprep.subr.mxu0 0.0
        %1207 = vmatpush2.msra.mxu0 0.0
        %1208 = vmatprep.subr.mxu0 0.0
        %1209 = vmatpush2.msra.mxu0 0.0
        %1210 = vmatprep.subr.mxu0 0.0
        %1211 = vmatpush2.msra.mxu0 0.0
        %1212 = vmatprep.subr.mxu0 0.0
        %1213 = vmatpush2.msra.mxu0 0.0
        %1214 = vmatprep.subr.mxu0 0.0
        %1215 = vmatpush2.msra.mxu0 0.0
        %1216 = vmatprep.subr.mxu0 0.0
        %1217 = vmatpush2.msra.mxu0 0.0
        %1218 = vmatprep.subr.mxu0 0.0
        %1219 = vmatpush2.msra.mxu0 0.0
        %1220 = vmatprep.subr.mxu0 0.0
        %1221 = vmatpush2.msra.mxu0 0.0
        %1222 = vmatprep.subr.mxu0 0.0
        %1223 = vmatpush2.msra.mxu0 0.0
        %1224 = vmatprep.subr.mxu0 0.0
        %1225 = vmatpush2.msra.mxu0 0.0
        %1226 = vmatprep.subr.mxu0 0.0
        %1227 = vmatpush2.msra.mxu0 0.0
        %1228 = vmatprep.subr.mxu0 0.0
        %1229 = vmatpush2.msra.mxu0 0.0
        %1230 = vmatprep.subr.mxu0 0.0
        %1231 = vmatpush2.msra.mxu0 0.0
        %1232 = vmatprep.subr.mxu0 0.0
        %1233 = vmatpush2.msra.mxu0 0.0
        %1234 = vmatprep.mubr.f32.mxu0 0.0
        %1235 = vmatmul.mubr.f32.gmra.mxu0 %v712
        %v1236 = vpop.f32.mrf.mxu0
        %v1237 = vadd.f32 0.0, %v1236
        %v1238 = vpop.f32.mrf.mxu0
        %1239 = vdwg.mxu0
        %v1240 = vadd.f32 %v1151, %v1237
        %v1241 = vld [vmem:[%s10] sm:$0x1]
        %v1243 = vlaneseq
        %v1244 = vshrl.u32 %v1243, 7
        %v1245 = vsub.s32 0, %v1244
        %v1246 = vrot.slane %v1241, %v1245
        %v1248 = vadd.f32 %v1240, %v1246
        %v1249 = vld [vmem:[#allocation18] sm:$0xff]
        %v1250 = vld [vmem:[#allocation18 + $0x8] sm:$0xff]
        %v1251 = vld [vmem:[#allocation18 + $0x10] sm:$0xff]
        %v1252 = vld [vmem:[#allocation18 + $0x18] sm:$0xff]
        %v1253 = vld [vmem:[#allocation18 + $0x20] sm:$0xff]
        %v1254 = vld [vmem:[#allocation18 + $0x28] sm:$0xff]
        %v1255 = vld [vmem:[#allocation18 + $0x30] sm:$0xff]
        %v1256 = vld [vmem:[#allocation18 + $0x38] sm:$0xff]
        %v1257 = vld [vmem:[#allocation18 + $0x40] sm:$0xff]
        %v1258 = vld [vmem:[#allocation18 + $0x48] sm:$0xff]
        %v1259 = vld [vmem:[#allocation18 + $0x50] sm:$0xff]
        %v1260 = vld [vmem:[#allocation18 + $0x58] sm:$0xff]
        %v1261 = vld [vmem:[#allocation18 + $0x60] sm:$0xff]
        %v1262 = vld [vmem:[#allocation18 + $0x68] sm:$0xff]
        %v1263 = vld [vmem:[#allocation18 + $0x70] sm:$0xff]
        %v1264 = vld [vmem:[#allocation18 + $0x78] sm:$0xff]
        %v1265 = vld [vmem:[#allocation20] sm:$0xff]
        %v1266 = vld [vmem:[#allocation20 + $0x8] sm:$0xff]
        %v1267 = vld [vmem:[#allocation20 + $0x10] sm:$0xff]
        %v1268 = vld [vmem:[#allocation20 + $0x18] sm:$0xff]
        %v1269 = vld [vmem:[#allocation20 + $0x20] sm:$0xff]
        %v1270 = vld [vmem:[#allocation20 + $0x28] sm:$0xff]
        %v1271 = vld [vmem:[#allocation20 + $0x30] sm:$0xff]
        %v1272 = vld [vmem:[#allocation20 + $0x38] sm:$0xff]
        %v1273 = vld [vmem:[#allocation20 + $0x40] sm:$0xff]
        %v1274 = vld [vmem:[#allocation20 + $0x48] sm:$0xff]
        %v1275 = vld [vmem:[#allocation20 + $0x50] sm:$0xff]
        %v1276 = vld [vmem:[#allocation20 + $0x58] sm:$0xff]
        %v1277 = vld [vmem:[#allocation20 + $0x60] sm:$0xff]
        %v1278 = vld [vmem:[#allocation20 + $0x68] sm:$0xff]
        %v1279 = vld [vmem:[#allocation20 + $0x70] sm:$0xff]
        %v1280 = vld [vmem:[#allocation20 + $0x78] sm:$0xff]
        %1281 = vmatprep.subr.mxu0 0.0
        %1282 = vmatpush1.msra.mxu0 %v1280
        %1283 = vmatprep.subr.mxu0 0.0
        %1284 = vmatpush1.msra.mxu0 %v1279
        %1285 = vmatprep.subr.mxu0 0.0
        %1286 = vmatpush1.msra.mxu0 %v1278
        %1287 = vmatprep.subr.mxu0 0.0
        %1288 = vmatpush1.msra.mxu0 %v1277
        %1289 = vmatprep.subr.mxu0 0.0
        %1290 = vmatpush1.msra.mxu0 %v1276
        %1291 = vmatprep.subr.mxu0 0.0
        %1292 = vmatpush1.msra.mxu0 %v1275
        %1293 = vmatprep.subr.mxu0 0.0
        %1294 = vmatpush1.msra.mxu0 %v1274
        %1295 = vmatprep.subr.mxu0 0.0
        %1296 = vmatpush1.msra.mxu0 %v1273
        %1297 = vmatprep.subr.mxu0 0.0
        %1298 = vmatpush1.msra.mxu0 %v1272
        %1299 = vmatprep.subr.mxu0 0.0
        %1300 = vmatpush1.msra.mxu0 %v1271
        %1301 = vmatprep.subr.mxu0 0.0
        %1302 = vmatpush1.msra.mxu0 %v1270
        %1303 = vmatprep.subr.mxu0 0.0
        %1304 = vmatpush1.msra.mxu0 %v1269
        %1305 = vmatprep.subr.mxu0 0.0
        %1306 = vmatpush1.msra.mxu0 %v1268
        %1307 = vmatprep.subr.mxu0 0.0
        %1308 = vmatpush1.msra.mxu0 %v1267
        %1309 = vmatprep.subr.mxu0 0.0
        %1310 = vmatpush1.msra.mxu0 %v1266
        %1311 = vmatprep.subr.mxu0 0.0
        %1312 = vmatpush1.msra.mxu0 %v1265
        %1313 = vmatprep.subr.mxu0 0.0
        %1314 = vmatpush2.msra.mxu0 0.0
        %1315 = vmatprep.subr.mxu0 0.0
        %1316 = vmatpush2.msra.mxu0 0.0
        %1317 = vmatprep.subr.mxu0 0.0
        %1318 = vmatpush2.msra.mxu0 0.0
        %1319 = vmatprep.subr.mxu0 0.0
        %1320 = vmatpush2.msra.mxu0 0.0
        %1321 = vmatprep.subr.mxu0 0.0
        %1322 = vmatpush2.msra.mxu0 0.0
        %1323 = vmatprep.subr.mxu0 0.0
        %1324 = vmatpush2.msra.mxu0 0.0
        %1325 = vmatprep.subr.mxu0 0.0
        %1326 = vmatpush2.msra.mxu0 0.0
        %1327 = vmatprep.subr.mxu0 0.0
        %1328 = vmatpush2.msra.mxu0 0.0
        %1329 = vmatprep.subr.mxu0 0.0
        %1330 = vmatpush2.msra.mxu0 0.0
        %1331 = vmatprep.subr.mxu0 0.0
        %1332 = vmatpush2.msra.mxu0 0.0
        %1333 = vmatprep.subr.mxu0 0.0
        %1334 = vmatpush2.msra.mxu0 0.0
        %1335 = vmatprep.subr.mxu0 0.0
        %1336 = vmatpush2.msra.mxu0 0.0
        %1337 = vmatprep.subr.mxu0 0.0
        %1338 = vmatpush2.msra.mxu0 0.0
        %1339 = vmatprep.subr.mxu0 0.0
        %1340 = vmatpush2.msra.mxu0 0.0
        %1341 = vmatprep.subr.mxu0 0.0
        %1342 = vmatpush2.msra.mxu0 0.0
        %1343 = vmatprep.subr.mxu0 0.0
        %1344 = vmatpush2.msra.mxu0 0.0
        %1345 = vmatprep.mubr.f32.mxu0 0.0
        %1346 = vmatmul.mubr.f32.gmra.mxu0 %v1248
        %v1347 = vpop.f32.mrf.mxu0
        %v1348 = vadd.f32 0.0, %v1347
        %v1349 = vpop.f32.mrf.mxu0
        %1350 = vdwg.mxu0
        %1351 = vmatprep.subr.mxu0 0.0
        %1352 = vmatpush1.msra.mxu0 %v1264
        %1353 = vmatprep.subr.mxu0 0.0
        %1354 = vmatpush1.msra.mxu0 %v1263
        %1355 = vmatprep.subr.mxu0 0.0
        %1356 = vmatpush1.msra.mxu0 %v1262
        %1357 = vmatprep.subr.mxu0 0.0
        %1358 = vmatpush1.msra.mxu0 %v1261
        %1359 = vmatprep.subr.mxu0 0.0
        %1360 = vmatpush1.msra.mxu0 %v1260
        %1361 = vmatprep.subr.mxu0 0.0
        %1362 = vmatpush1.msra.mxu0 %v1259
        %1363 = vmatprep.subr.mxu0 0.0
        %1364 = vmatpush1.msra.mxu0 %v1258
        %1365 = vmatprep.subr.mxu0 0.0
        %1366 = vmatpush1.msra.mxu0 %v1257
        %1367 = vmatprep.subr.mxu0 0.0
        %1368 = vmatpush1.msra.mxu0 %v1256
        %1369 = vmatprep.subr.mxu0 0.0
        %1370 = vmatpush1.msra.mxu0 %v1255
        %1371 = vmatprep.subr.mxu0 0.0
        %1372 = vmatpush1.msra.mxu0 %v1254
        %1373 = vmatprep.subr.mxu0 0.0
        %1374 = vmatpush1.msra.mxu0 %v1253
        %1375 = vmatprep.subr.mxu0 0.0
        %1376 = vmatpush1.msra.mxu0 %v1252
        %1377 = vmatprep.subr.mxu0 0.0
        %1378 = vmatpush1.msra.mxu0 %v1251
        %1379 = vmatprep.subr.mxu0 0.0
        %1380 = vmatpush1.msra.mxu0 %v1250
        %1381 = vmatprep.subr.mxu0 0.0
        %1382 = vmatpush1.msra.mxu0 %v1249
        %1383 = vmatprep.subr.mxu0 0.0
        %1384 = vmatpush2.msra.mxu0 0.0
        %1385 = vmatprep.subr.mxu0 0.0
        %1386 = vmatpush2.msra.mxu0 0.0
        %1387 = vmatprep.subr.mxu0 0.0
        %1388 = vmatpush2.msra.mxu0 0.0
        %1389 = vmatprep.subr.mxu0 0.0
        %1390 = vmatpush2.msra.mxu0 0.0
        %1391 = vmatprep.subr.mxu0 0.0
        %1392 = vmatpush2.msra.mxu0 0.0
        %1393 = vmatprep.subr.mxu0 0.0
        %1394 = vmatpush2.msra.mxu0 0.0
        %1395 = vmatprep.subr.mxu0 0.0
        %1396 = vmatpush2.msra.mxu0 0.0
        %1397 = vmatprep.subr.mxu0 0.0
        %1398 = vmatpush2.msra.mxu0 0.0
        %1399 = vmatprep.subr.mxu0 0.0
        %1400 = vmatpush2.msra.mxu0 0.0
        %1401 = vmatprep.subr.mxu0 0.0
        %1402 = vmatpush2.msra.mxu0 0.0
        %1403 = vmatprep.subr.mxu0 0.0
        %1404 = vmatpush2.msra.mxu0 0.0
        %1405 = vmatprep.subr.mxu0 0.0
        %1406 = vmatpush2.msra.mxu0 0.0
        %1407 = vmatprep.subr.mxu0 0.0
        %1408 = vmatpush2.msra.mxu0 0.0
        %1409 = vmatprep.subr.mxu0 0.0
        %1410 = vmatpush2.msra.mxu0 0.0
        %1411 = vmatprep.subr.mxu0 0.0
        %1412 = vmatpush2.msra.mxu0 0.0
        %1413 = vmatprep.subr.mxu0 0.0
        %1414 = vmatpush2.msra.mxu0 0.0
        %1415 = vmatprep.mubr.f32.mxu0 0.0
        %1416 = vmatmul.mubr.f32.gmra.mxu0 %v981
        %v1417 = vpop.f32.mrf.mxu0
        %v1418 = vadd.f32 %v1348, %v1417
        %v1419 = vpop.f32.mrf.mxu0
        %1420 = vdwg.mxu0
        %v1421 = vld [vmem:[%s13] sm:$0x1]
        %v1423 = vlaneseq
        %v1424 = vshrl.u32 %v1423, 7
        %v1425 = vsub.s32 0, %v1424
        %v1426 = vrot.slane %v1421, %v1425
        %v1428 = vadd.f32 %v1418, %v1426
        %v1429 = vlaneseq
        %v1430 = vand.u32 %v1429, 127
        %vm1431 = vcmp.lt.s32.totalorder %v1430, 16
        %v1432 = vsel %vm1431, %v1428, -1e+30
        %1433 = vmax.xlane.f32.xlu0 %v1432
        %v1434 = vpop.xlane.xlu0 %1433
        %v1435 = vsub.f32 %v1432, %v1434
        %v1436 = vmul.f32 %v1435, 1.442695
        %v1437 = vpow.pop %v1436
        %1438 = vadd.xlane.f32.xlu0 %v1437
        %v1439 = vpop.xlane.xlu0 %1438
        %v1440 = vlog2.pop %v1439
        %v1441 = vmul.f32 %v1440, 0.6931472
        %v1442 = vadd.f32 %v1434, %v1441
        %v1443 = vsub.f32 %v1432, %v1442
        %1444 = vst [vmem:[%s703] sm:$0xff] %v1443
        %1445 = vst [vmem:[#allocation2] sm:$0xff] %v981
        %1446 = vst [vmem:[#allocation22] sm:$0xff] %v981
        %s1447 = sand.u32 %s376, 1
        %s1448 = scalar_lea.sflag [#allocation5], %s1447
        %s1449 = sand.u32 %s376, 1
        %s1450 = smul.addr %s1449, 8
        %s1451 = scalar_lea.vmem [#allocation21], %s1450
        // Predicated region
        $region125: #{tpu_custom_call.1} parent=75 // pred_check
          %p1452 = pneg %p386
        $region126: #{tpu_custom_call.1} parent=75 // pred_check_branch
          %1454 = sbr.rel (%p1452) target = $region128
        $region127: #{tpu_custom_call.1} parent=75 // pred_region
          %s1456 = ssub.s32 128, 128
          %1457 = vsyncadd %s1448, %s1456
          %s1458 = sadd.s32 %s45, %s46
          %s1459 = smul.addr %s1458, 128
          %s1460 = scalar_lea.hbm %s14, %s1459
          %s1462 = sshll.u32 %s1451, 4
          %s1463 = int_to_ptr.vmem [resolvable:$true] %s1462
          %1465 = dma.vmem_to_hbm [thread:$0]  %s1463, 128, %s1460, %s1448
        $region128: #{tpu_custom_call.1} parent=75 // pred_fallthru
          _
        // Predicated region
        $region129: #{tpu_custom_call.1} parent=75 // pred_check
          %p1466 = pneg %p412
        $region130: #{tpu_custom_call.1} parent=75 // pred_check_branch
          %1468 = sbr.rel (%p1466) target = $region132
        $region131: #{tpu_custom_call.1} parent=75 // pred_region
          %s1470 = ssub.s32 128, 128
          %1471 = vsyncadd [#allocation23], %s1470
          %s1472 = smul.addr %s45, 128
          %s1473 = scalar_lea.hbm %s15, %s1472
          %s1475 = sshll.u32 [#allocation22], 4
          %s1476 = int_to_ptr.vmem [resolvable:$true] %s1475
          %1478 = dma.vmem_to_hbm [thread:$0]  %s1476, 128, %s1473, [#allocation23]
        $region132: #{tpu_custom_call.1} parent=75 // pred_fallthru
          _
        // Predicated region
        $region133: #{tpu_custom_call.1} parent=75 // pred_check
          %p1479 = pneg %p412
        $region134: #{tpu_custom_call.1} parent=75 // pred_check_branch
          %1481 = sbr.rel (%p1479) target = $region136
        $region135: #{tpu_custom_call.1} parent=75 // pred_region
          %1482 = dma.done [#allocation23], 128
        $region136: #{tpu_custom_call.1} parent=75 // pred_fallthru
          _
      $region76: #{tpu_custom_call.1} parent=5 // pred_fallthru
        _
      %p1483 = scmp.le.s32.totalorder 2, %s36
      // Predicated region
      $region137: #{tpu_custom_call.1} parent=5 // pred_check
        %p1484 = pneg %p1483
      $region138: #{tpu_custom_call.1} parent=5 // pred_check_branch
        %1486 = sbr.rel (%p1484) target = $region140
      $region139: #{tpu_custom_call.1} parent=5 // pred_region
        %s1487 = ssub.s32 %s36, 2
        // Predicated region
        $region141: #{tpu_custom_call.1} parent=139 // pred_check
          %p1488 = pneg %p392
        $region142: #{tpu_custom_call.1} parent=139 // pred_check_branch
          %1490 = sbr.rel (%p1488) target = $region144
        $region143: #{tpu_custom_call.1} parent=139 // pred_region
          %s1491 = sand.u32 %s377, 1
          %s1492 = scalar_lea.sflag [#allocation5], %s1491
          %s1493 = sand.u32 %s377, 1
          %s1494 = smul.addr %s1493, 8
          %s1495 = scalar_lea.vmem [#allocation21], %s1494
          %1496 = dma.done %s1492, 128
        $region144: #{tpu_custom_call.1} parent=139 // pred_fallthru
          _
      $region140: #{tpu_custom_call.1} parent=5 // pred_fallthru
        _
    $region6: #{tpu_custom_call.1} parent=1 // loop_footer
      %s40 = sadd.s32 1, %s36
    $region7: #{tpu_custom_call.1} parent=1 // loop_footer_branch
      %35 = sbr.rel target = $region3
    $region8: #{tpu_custom_call.1} parent=1 // loop_exit
      _
    %1497 = vsyncpa [#allocation4], 1
    %s1498 = scalar_lea.sflag [#allocation4], 1
    %1499 = vsyncpa %s1498, 1
    %1500 = vsyncpa [#allocation7], 1
    %s1501 = scalar_lea.sflag [#allocation7], 1
    %1502 = vsyncpa %s1501, 1
    %1503 = vsyncpa [#allocation10], 1
    %1504 = vsyncpa [#allocation13], 1
    %1505 = vsyncpa [#allocation16], 1
    %1506 = vsyncpa [#allocation19], 1
    %1507 = vsyncpa [#allocation5], 1
    %s1508 = scalar_lea.sflag [#allocation5], 1
    %1509 = vsyncpa %s1508, 1
    %1510 = vsyncpa [#allocation23], 1

</llo_original>
